<compile_context>
chip_gen: v6e
topology: v6e:2x2x1
jax: 0.10.0
libtpu: 0.0.40
codegen_flags: <defaults>
</compile_context>

<pallas_src>
import functools
import math

import jax
import jax.numpy as jnp
from jax import lax
from jax.experimental import pallas as pl
from jax.experimental.pallas import tpu as pltpu


# ----------------------------------------------------------------------------
# Fused Pallas kernel: one BriefDecoderLayer per grid step (one batch element)
# ----------------------------------------------------------------------------

def _norm(x, a, b, eps):
    # torch: alpha * (x - mean) / (std_unbiased + eps) + bias
    mean = jnp.mean(x, axis=-1, keepdims=True)
    var = jnp.sum((x - mean) ** 2, axis=-1, keepdims=True) / (x.shape[-1] - 1)
    std = jnp.sqrt(var)
    return a * (x - mean) / (std + eps) + b


def _brief_decoder_layer_kernel(
        x_ref, e_ref,
        n2a_ref, n2b_ref, n3a_ref, n3b_ref,
        wq_ref, bq_ref, wk_ref, bk_ref, wv_ref, bv_ref, wo_ref, bo_ref,
        w1_ref, b1_ref, w2_ref, b2_ref,
        o_ref, *, heads, d_k, eps):
    x = x_ref[0]          # (Sq, D)
    e = e_ref[0]          # (Sk, D)

    # ---- sub-block 1: x = x + attn_2(norm_2(x), e, e) ----------------------
    x2 = _norm(x, n2a_ref[...], n2b_ref[...], eps)

    q = jnp.dot(x2, wq_ref[...], preferred_element_type=jnp.float32) + bq_ref[...]
    k = jnp.dot(e, wk_ref[...], preferred_element_type=jnp.float32) + bk_ref[...]
    v = jnp.dot(e, wv_ref[...], preferred_element_type=jnp.float32) + bv_ref[...]

    # Put heads on a leading (batch) axis using static lane slices + a
    # leading-axis stack (no relayout of the tiled minor dims), so the per-head
    # matmuls become a single batched MXU contraction each.
    qh = jnp.stack([q[:, h * d_k:(h + 1) * d_k] for h in range(heads)], axis=0)  # (H,Sq,dk)
    kh = jnp.stack([k[:, h * d_k:(h + 1) * d_k] for h in range(heads)], axis=0)  # (H,Sk,dk)
    vh = jnp.stack([v[:, h * d_k:(h + 1) * d_k] for h in range(heads)], axis=0)  # (H,Sk,dk)

    s = jnp.einsum("hqd,hkd->hqk", qh, kh,
                   preferred_element_type=jnp.float32) * (1.0 / math.sqrt(d_k))
    s = s - jnp.max(s, axis=-1, keepdims=True)
    p = jnp.exp(s)
    # Softmax denominator via EUP reciprocal (its own bundle slot -> ~free).
    p = p * pl.reciprocal(jnp.sum(p, axis=-1, keepdims=True), approx=True)

    oh = jnp.einsum("hqk,hkd->hqd", p, vh, preferred_element_type=jnp.float32)   # (H,Sq,dk)
    concat = jnp.concatenate([oh[h] for h in range(heads)], axis=-1)              # (Sq, D)
    attn_out = (jnp.dot(concat, wo_ref[...], preferred_element_type=jnp.float32)
                + bo_ref[...])

    x = x + attn_out      # residual (dropout_2 = identity in eval)

    # ---- sub-block 2: x = x + ff(norm_3(x)) --------------------------------
    x3 = _norm(x, n3a_ref[...], n3b_ref[...], eps)
    h1 = jnp.dot(x3, w1_ref[...], preferred_element_type=jnp.float32) + b1_ref[...]
    h1 = jnp.maximum(h1, 0.0)
    y = jnp.dot(h1, w2_ref[...], preferred_element_type=jnp.float32) + b2_ref[...]

    o_ref[0] = x + y      # residual (dropout_3 = identity in eval)


# ----------------------------------------------------------------------------
# Wrapper
# ----------------------------------------------------------------------------

def brief_decoder_layer(x, e_outputs, params, heads, eps=1e-6):
    B, Sq, D = x.shape
    _, Sk, _ = e_outputs.shape
    d_k = D // heads

    wq, bq, wk, bk, wv, bv, wo, bo = params["attn"]
    w1, b1, w2, b2 = params["ff"]
    d_ff = w1.shape[1]

    row = lambda t: t.reshape(1, -1)

    vec_d = pl.BlockSpec((1, D), lambda b: (0, 0))
    vec_ff = pl.BlockSpec((1, d_ff), lambda b: (0, 0))
    w_dd = pl.BlockSpec((D, D), lambda b: (0, 0))

    return pl.pallas_call(
        functools.partial(_brief_decoder_layer_kernel,
                          heads=heads, d_k=d_k, eps=eps),
        out_shape=jax.ShapeDtypeStruct((B, Sq, D), jnp.float32),
        grid=(B,),
        in_specs=[
            pl.BlockSpec((1, Sq, D), lambda b: (b, 0, 0)),   # x
            pl.BlockSpec((1, Sk, D), lambda b: (b, 0, 0)),   # e_outputs
            vec_d, vec_d, vec_d, vec_d,                      # norm_2 / norm_3 params
            w_dd, vec_d, w_dd, vec_d, w_dd, vec_d, w_dd, vec_d,   # Wq,bq,Wk,bk,Wv,bv,Wo,bo
            pl.BlockSpec((D, d_ff), lambda b: (0, 0)), vec_ff,     # W1,b1
            pl.BlockSpec((d_ff, D), lambda b: (0, 0)), vec_d,      # W2,b2
        ],
        out_specs=pl.BlockSpec((1, Sq, D), lambda b: (b, 0, 0)),
        compiler_params=pltpu.CompilerParams(
            dimension_semantics=("parallel",)),   # shards batch over v7x's 2 TCs
    )(x, e_outputs,
      row(params["n2_a"]), row(params["n2_b"]),
      row(params["n3_a"]), row(params["n3_b"]),
      wq, row(bq), wk, row(bk), wv, row(bv), wo, row(bo),
      w1, row(b1), w2, row(b2))


# ----------------------------------------------------------------------------
# Deterministic parameter init (matches nn.Linear / Norm shapes)
# ----------------------------------------------------------------------------

def _make_linear(key, d_in, d_out):
    k1, k2 = jax.random.split(key)
    bound = 1.0 / math.sqrt(d_in)
    w = jax.random.uniform(k1, (d_in, d_out), jnp.float32, -bound, bound)
    b = jax.random.uniform(k2, (d_out,), jnp.float32, -bound, bound)
    return w, b


def _init_mha(key, d_model):
    ks = jax.random.split(key, 4)
    wq, bq = _make_linear(ks[0], d_model, d_model)
    wk, bk = _make_linear(ks[1], d_model, d_model)
    wv, bv = _make_linear(ks[2], d_model, d_model)
    wo, bo = _make_linear(ks[3], d_model, d_model)
    return (wq, bq, wk, bk, wv, bv, wo, bo)


def _init_ff(key, d_model, d_ff=512):
    k1, k2 = jax.random.split(key)
    w1, b1 = _make_linear(k1, d_model, d_ff)
    w2, b2 = _make_linear(k2, d_ff, d_model)
    return (w1, b1, w2, b2)


def init_brief_decoder_layer(key, d_model):
    k1, k2 = jax.random.split(key)
    return dict(
        n2_a=jnp.ones((d_model,), jnp.float32), n2_b=jnp.zeros((d_model,), jnp.float32),
        n3_a=jnp.ones((d_model,), jnp.float32), n3_b=jnp.zeros((d_model,), jnp.float32),
        attn=_init_mha(k1, d_model), ff=_init_ff(k2, d_model))


# ----------------------------------------------------------------------------
# Pure-JAX reference (correctness check)
# ----------------------------------------------------------------------------

def _ref_norm(x, a, b, eps=1e-6):
    mean = x.mean(-1, keepdims=True)
    std = jnp.sqrt(((x - mean) ** 2).sum(-1, keepdims=True) / (x.shape[-1] - 1))
    return a * (x - mean) / (std + eps) + b


def _ref_mha(xq, xkv, p, heads):
    wq, bq, wk, bk, wv, bv, wo, bo = p
    B, Sq, D = xq.shape
    d_k = D // heads
    q = (xq @ wq + bq).reshape(B, Sq, heads, d_k).transpose(0, 2, 1, 3)
    k = (xkv @ wk + bk).reshape(B, -1, heads, d_k).transpose(0, 2, 1, 3)
    v = (xkv @ wv + bv).reshape(B, -1, heads, d_k).transpose(0, 2, 1, 3)
    s = jnp.einsum("bhqd,bhkd->bhqk", q, k) / math.sqrt(d_k)
    a = jax.nn.softmax(s, axis=-1)
    o = jnp.einsum("bhqk,bhkd->bhqd", a, v).transpose(0, 2, 1, 3).reshape(B, Sq, D)
    return o @ wo + bo


def _ref_ff(x, p):
    w1, b1, w2, b2 = p
    return jnp.maximum(x @ w1 + b1, 0.0) @ w2 + b2


def _ref_decoder_layer(x, e, p, heads):
    x2 = _ref_norm(x, p["n2_a"], p["n2_b"])
    x = x + _ref_mha(x2, e, p["attn"], heads)
    x2 = _ref_norm(x, p["n3_a"], p["n3_b"])
    return x + _ref_ff(x2, p["ff"])


# ----------------------------------------------------------------------------
# Main
# ----------------------------------------------------------------------------

if __name__ == "__main__":
    d_model, heads = 32, 4
    B, Sq, Sk = 2, 16, 8

    key = jax.random.PRNGKey(0)
    kx, ke, kp = jax.random.split(key, 3)
    x = jax.random.normal(kx, (B, Sq, d_model), jnp.float32)
    e_outputs = jax.random.normal(ke, (B, Sk, d_model), jnp.float32)
    params = init_brief_decoder_layer(kp, d_model)

    run = jax.jit(functools.partial(brief_decoder_layer, heads=heads))
    out = run(x, e_outputs, params)
    jax.block_until_ready(out)

    # sanity check vs. pure-JAX reference (tolerance loosened slightly because
    # the in-kernel softmax uses the approximate EUP reciprocal).
    ref = _ref_decoder_layer(x, e_outputs, params, heads)
    assert out.shape == ref.shape
    assert jnp.allclose(out, ref, atol=2e-2, rtol=2e-2), "decoder layer output mismatch"

    print("KERNEL_OK")
</pallas_src>

<mosaic_0001>
module attributes {stable_mosaic.version = 11 : i64} {
  func.func @_brief_decoder_layer_kernel(%arg0: i32, %arg1: memref<1x16x32xf32, #tpu.memory_space<vmem>>, %arg2: memref<1x8x32xf32, #tpu.memory_space<vmem>>, %arg3: memref<1x32xf32, #tpu.memory_space<vmem>>, %arg4: memref<1x32xf32, #tpu.memory_space<vmem>>, %arg5: memref<1x32xf32, #tpu.memory_space<vmem>>, %arg6: memref<1x32xf32, #tpu.memory_space<vmem>>, %arg7: memref<32x32xf32, #tpu.memory_space<vmem>>, %arg8: memref<1x32xf32, #tpu.memory_space<vmem>>, %arg9: memref<32x32xf32, #tpu.memory_space<vmem>>, %arg10: memref<1x32xf32, #tpu.memory_space<vmem>>, %arg11: memref<32x32xf32, #tpu.memory_space<vmem>>, %arg12: memref<1x32xf32, #tpu.memory_space<vmem>>, %arg13: memref<32x32xf32, #tpu.memory_space<vmem>>, %arg14: memref<1x32xf32, #tpu.memory_space<vmem>>, %arg15: memref<32x512xf32, #tpu.memory_space<vmem>>, %arg16: memref<1x512xf32, #tpu.memory_space<vmem>>, %arg17: memref<512x32xf32, #tpu.memory_space<vmem>>, %arg18: memref<1x32xf32, #tpu.memory_space<vmem>>, %arg19: memref<1x16x32xf32, #tpu.memory_space<vmem>>) attributes {dimension_semantics = [#tpu.dimension_semantics<parallel>], iteration_bounds = array<i64: 2>, scalar_prefetch = 0 : i64, scratch_operands = 0 : i64, tpu.core_type = #tpu.core_type<tc>, window_params = [{transform_indices = @transform_0, window_bounds = array<i64: 1, 16, 32>}, {transform_indices = @transform_1, window_bounds = array<i64: 1, 8, 32>}, {pipeline_mode = #tpu.pipeline_mode<synchronous>, transform_indices = @transform_2, window_bounds = array<i64: 1, 32>}, {pipeline_mode = #tpu.pipeline_mode<synchronous>, transform_indices = @transform_3, window_bounds = array<i64: 1, 32>}, {pipeline_mode = #tpu.pipeline_mode<synchronous>, transform_indices = @transform_4, window_bounds = array<i64: 1, 32>}, {pipeline_mode = #tpu.pipeline_mode<synchronous>, transform_indices = @transform_5, window_bounds = array<i64: 1, 32>}, {pipeline_mode = #tpu.pipeline_mode<synchronous>, transform_indices = @transform_6, window_bounds = array<i64: 32, 32>}, {pipeline_mode = #tpu.pipeline_mode<synchronous>, transform_indices = @transform_7, window_bounds = array<i64: 1, 32>}, {pipeline_mode = #tpu.pipeline_mode<synchronous>, transform_indices = @transform_8, window_bounds = array<i64: 32, 32>}, {pipeline_mode = #tpu.pipeline_mode<synchronous>, transform_indices = @transform_9, window_bounds = array<i64: 1, 32>}, {pipeline_mode = #tpu.pipeline_mode<synchronous>, transform_indices = @transform_10, window_bounds = array<i64: 32, 32>}, {pipeline_mode = #tpu.pipeline_mode<synchronous>, transform_indices = @transform_11, window_bounds = array<i64: 1, 32>}, {pipeline_mode = #tpu.pipeline_mode<synchronous>, transform_indices = @transform_12, window_bounds = array<i64: 32, 32>}, {pipeline_mode = #tpu.pipeline_mode<synchronous>, transform_indices = @transform_13, window_bounds = array<i64: 1, 32>}, {pipeline_mode = #tpu.pipeline_mode<synchronous>, transform_indices = @transform_14, window_bounds = array<i64: 32, 512>}, {pipeline_mode = #tpu.pipeline_mode<synchronous>, transform_indices = @transform_15, window_bounds = array<i64: 1, 512>}, {pipeline_mode = #tpu.pipeline_mode<synchronous>, transform_indices = @transform_16, window_bounds = array<i64: 512, 32>}, {pipeline_mode = #tpu.pipeline_mode<synchronous>, transform_indices = @transform_17, window_bounds = array<i64: 1, 32>}, {transform_indices = @transform_18, window_bounds = array<i64: 1, 16, 32>}]} {
    %c0 = arith.constant 0 : index
    %c0_0 = arith.constant 0 : index
    %c0_1 = arith.constant 0 : index
    %0 = vector.load %arg1[%c0, %c0_0, %c0_1] : memref<1x16x32xf32, #tpu.memory_space<vmem>>, vector<1x16x32xf32>
    %1 = vector.shape_cast %0 : vector<1x16x32xf32> to vector<16x32xf32>
    %c0_2 = arith.constant 0 : index
    %c0_3 = arith.constant 0 : index
    %c0_4 = arith.constant 0 : index
    %2 = vector.load %arg2[%c0_2, %c0_3, %c0_4] : memref<1x8x32xf32, #tpu.memory_space<vmem>>, vector<1x8x32xf32>
    %3 = vector.shape_cast %2 : vector<1x8x32xf32> to vector<8x32xf32>
    %c0_5 = arith.constant 0 : index
    %c0_6 = arith.constant 0 : index
    %4 = vector.load %arg3[%c0_5, %c0_6] : memref<1x32xf32, #tpu.memory_space<vmem>>, vector<1x32xf32>
    %c0_7 = arith.constant 0 : index
    %c0_8 = arith.constant 0 : index
    %5 = vector.load %arg4[%c0_7, %c0_8] : memref<1x32xf32, #tpu.memory_space<vmem>>, vector<1x32xf32>
    %cst = arith.constant dense<0.000000e+00> : vector<16xf32>
    %6 = vector.multi_reduction <add>, %1, %cst [1] : vector<16x32xf32> to vector<16xf32>
    %7 = vector.shape_cast %6 : vector<16xf32> to vector<16x1xf32>
    %cst_9 = arith.constant 3.200000e+01 : f32
    %8 = vector.broadcast %cst_9 : f32 to vector<16x1xf32>
    %9 = arith.divf %7, %8 : vector<16x1xf32>
    %10 = vector.broadcast %9 : vector<16x1xf32> to vector<16x32xf32>
    %11 = arith.subf %1, %10 : vector<16x32xf32>
    %12 = arith.mulf %11, %11 : vector<16x32xf32>
    %cst_10 = arith.constant dense<0.000000e+00> : vector<16xf32>
    %13 = vector.multi_reduction <add>, %12, %cst_10 [1] : vector<16x32xf32> to vector<16xf32>
    %14 = vector.shape_cast %13 : vector<16xf32> to vector<16x1xf32>
    %cst_11 = arith.constant 3.100000e+01 : f32
    %15 = vector.broadcast %cst_11 : f32 to vector<16x1xf32>
    %16 = arith.divf %14, %15 : vector<16x1xf32>
    %17 = math.sqrt %16 : vector<16x1xf32>
    %18 = vector.broadcast %9 : vector<16x1xf32> to vector<16x32xf32>
    %19 = arith.subf %1, %18 : vector<16x32xf32>
    %20 = vector.broadcast %4 : vector<1x32xf32> to vector<16x32xf32>
    %21 = arith.mulf %20, %19 : vector<16x32xf32>
    %cst_12 = arith.constant 9.99999997E-7 : f32
    %22 = vector.broadcast %cst_12 : f32 to vector<16x1xf32>
    %23 = arith.addf %17, %22 : vector<16x1xf32>
    %24 = vector.broadcast %23 : vector<16x1xf32> to vector<16x32xf32>
    %25 = arith.divf %21, %24 : vector<16x32xf32>
    %26 = vector.broadcast %5 : vector<1x32xf32> to vector<16x32xf32>
    %27 = arith.addf %25, %26 : vector<16x32xf32>
    %c0_13 = arith.constant 0 : index
    %c0_14 = arith.constant 0 : index
    %28 = vector.load %arg7[%c0_13, %c0_14] : memref<32x32xf32, #tpu.memory_space<vmem>>, vector<32x32xf32>
    %cst_15 = arith.constant dense<0.000000e+00> : vector<16x32xf32>
    %29 = tpu.matmul %27, %28, %cst_15 {dimension_numbers = #tpu.dot_dimension_numbers<[1], [0], [0], [1], [0, 0, 1, 1], [], []>} : vector<16x32xf32>, vector<32x32xf32>, vector<16x32xf32> -> vector<16x32xf32>
    %c0_16 = arith.constant 0 : index
    %c0_17 = arith.constant 0 : index
    %30 = vector.load %arg8[%c0_16, %c0_17] : memref<1x32xf32, #tpu.memory_space<vmem>>, vector<1x32xf32>
    %31 = vector.broadcast %30 : vector<1x32xf32> to vector<16x32xf32>
    %32 = arith.addf %29, %31 : vector<16x32xf32>
    %c0_18 = arith.constant 0 : index
    %c0_19 = arith.constant 0 : index
    %33 = vector.load %arg9[%c0_18, %c0_19] : memref<32x32xf32, #tpu.memory_space<vmem>>, vector<32x32xf32>
    %cst_20 = arith.constant dense<0.000000e+00> : vector<8x32xf32>
    %34 = tpu.matmul %3, %33, %cst_20 {dimension_numbers = #tpu.dot_dimension_numbers<[1], [0], [0], [1], [0, 0, 1, 1], [], []>} : vector<8x32xf32>, vector<32x32xf32>, vector<8x32xf32> -> vector<8x32xf32>
    %c0_21 = arith.constant 0 : index
    %c0_22 = arith.constant 0 : index
    %35 = vector.load %arg10[%c0_21, %c0_22] : memref<1x32xf32, #tpu.memory_space<vmem>>, vector<1x32xf32>
    %36 = vector.broadcast %35 : vector<1x32xf32> to vector<8x32xf32>
    %37 = arith.addf %34, %36 : vector<8x32xf32>
    %c0_23 = arith.constant 0 : index
    %c0_24 = arith.constant 0 : index
    %38 = vector.load %arg11[%c0_23, %c0_24] : memref<32x32xf32, #tpu.memory_space<vmem>>, vector<32x32xf32>
    %cst_25 = arith.constant dense<0.000000e+00> : vector<8x32xf32>
    %39 = tpu.matmul %3, %38, %cst_25 {dimension_numbers = #tpu.dot_dimension_numbers<[1], [0], [0], [1], [0, 0, 1, 1], [], []>} : vector<8x32xf32>, vector<32x32xf32>, vector<8x32xf32> -> vector<8x32xf32>
    %c0_26 = arith.constant 0 : index
    %c0_27 = arith.constant 0 : index
    %40 = vector.load %arg12[%c0_26, %c0_27] : memref<1x32xf32, #tpu.memory_space<vmem>>, vector<1x32xf32>
    %41 = vector.broadcast %40 : vector<1x32xf32> to vector<8x32xf32>
    %42 = arith.addf %39, %41 : vector<8x32xf32>
    %43 = vector.extract_strided_slice %32 {offsets = [0, 0], sizes = [16, 8], strides = [1, 1]} : vector<16x32xf32> to vector<16x8xf32>
    %44 = vector.extract_strided_slice %32 {offsets = [0, 8], sizes = [16, 8], strides = [1, 1]} : vector<16x32xf32> to vector<16x8xf32>
    %45 = vector.extract_strided_slice %32 {offsets = [0, 16], sizes = [16, 8], strides = [1, 1]} : vector<16x32xf32> to vector<16x8xf32>
    %46 = vector.extract_strided_slice %32 {offsets = [0, 24], sizes = [16, 8], strides = [1, 1]} : vector<16x32xf32> to vector<16x8xf32>
    %47 = vector.shape_cast %43 : vector<16x8xf32> to vector<1x16x8xf32>
    %48 = vector.shape_cast %44 : vector<16x8xf32> to vector<1x16x8xf32>
    %49 = vector.shape_cast %45 : vector<16x8xf32> to vector<1x16x8xf32>
    %50 = vector.shape_cast %46 : vector<16x8xf32> to vector<1x16x8xf32>
    %51 = tpu.concatenate %47, %48, %49, %50 in 0 : vector<1x16x8xf32>, vector<1x16x8xf32>, vector<1x16x8xf32>, vector<1x16x8xf32> -> vector<4x16x8xf32>
    %52 = vector.extract_strided_slice %37 {offsets = [0, 0], sizes = [8, 8], strides = [1, 1]} : vector<8x32xf32> to vector<8x8xf32>
    %53 = vector.extract_strided_slice %37 {offsets = [0, 8], sizes = [8, 8], strides = [1, 1]} : vector<8x32xf32> to vector<8x8xf32>
    %54 = vector.extract_strided_slice %37 {offsets = [0, 16], sizes = [8, 8], strides = [1, 1]} : vector<8x32xf32> to vector<8x8xf32>
    %55 = vector.extract_strided_slice %37 {offsets = [0, 24], sizes = [8, 8], strides = [1, 1]} : vector<8x32xf32> to vector<8x8xf32>
    %56 = vector.shape_cast %52 : vector<8x8xf32> to vector<1x8x8xf32>
    %57 = vector.shape_cast %53 : vector<8x8xf32> to vector<1x8x8xf32>
    %58 = vector.shape_cast %54 : vector<8x8xf32> to vector<1x8x8xf32>
    %59 = vector.shape_cast %55 : vector<8x8xf32> to vector<1x8x8xf32>
    %60 = tpu.concatenate %56, %57, %58, %59 in 0 : vector<1x8x8xf32>, vector<1x8x8xf32>, vector<1x8x8xf32>, vector<1x8x8xf32> -> vector<4x8x8xf32>
    %61 = vector.extract_strided_slice %42 {offsets = [0, 0], sizes = [8, 8], strides = [1, 1]} : vector<8x32xf32> to vector<8x8xf32>
    %62 = vector.extract_strided_slice %42 {offsets = [0, 8], sizes = [8, 8], strides = [1, 1]} : vector<8x32xf32> to vector<8x8xf32>
    %63 = vector.extract_strided_slice %42 {offsets = [0, 16], sizes = [8, 8], strides = [1, 1]} : vector<8x32xf32> to vector<8x8xf32>
    %64 = vector.extract_strided_slice %42 {offsets = [0, 24], sizes = [8, 8], strides = [1, 1]} : vector<8x32xf32> to vector<8x8xf32>
    %65 = vector.shape_cast %61 : vector<8x8xf32> to vector<1x8x8xf32>
    %66 = vector.shape_cast %62 : vector<8x8xf32> to vector<1x8x8xf32>
    %67 = vector.shape_cast %63 : vector<8x8xf32> to vector<1x8x8xf32>
    %68 = vector.shape_cast %64 : vector<8x8xf32> to vector<1x8x8xf32>
    %69 = tpu.concatenate %65, %66, %67, %68 in 0 : vector<1x8x8xf32>, vector<1x8x8xf32>, vector<1x8x8xf32>, vector<1x8x8xf32> -> vector<4x8x8xf32>
    "tpu.trace_start"() <{level = 10 : i32, message = "hqd,hkd->hqk"}> : () -> ()
    %cst_28 = arith.constant dense<0.000000e+00> : vector<4x16x8xf32>
    %70 = tpu.matmul %51, %60, %cst_28 {dimension_numbers = #tpu.dot_dimension_numbers<[2], [2], [1], [1], [0, 0, 0, 1, 1, 1], [0], [0]>} : vector<4x16x8xf32>, vector<4x8x8xf32>, vector<4x16x8xf32> -> vector<4x16x8xf32>
    "tpu.trace_stop"() : () -> ()
    %cst_29 = arith.constant 0.353553385 : f32
    %71 = vector.broadcast %cst_29 : f32 to vector<4x16x8xf32>
    %72 = arith.mulf %70, %71 : vector<4x16x8xf32>
    %cst_30 = arith.constant dense<0xFF800000> : vector<4x16xf32>
    %73 = vector.multi_reduction <maximumf>, %72, %cst_30 [2] : vector<4x16x8xf32> to vector<4x16xf32>
    %74 = vector.shape_cast %73 : vector<4x16xf32> to vector<4x16x1xf32>
    %75 = vector.broadcast %74 : vector<4x16x1xf32> to vector<4x16x8xf32>
    %76 = arith.subf %72, %75 : vector<4x16x8xf32>
    %77 = math.exp %76 : vector<4x16x8xf32>
    %cst_31 = arith.constant dense<0.000000e+00> : vector<4x16xf32>
    %78 = vector.multi_reduction <add>, %77, %cst_31 [2] : vector<4x16x8xf32> to vector<4x16xf32>
    %79 = vector.shape_cast %78 : vector<4x16xf32> to vector<4x16x1xf32>
    %80 = tpu.reciprocal %79 {approx = true} : vector<4x16x1xf32> -> vector<4x16x1xf32>
    %81 = vector.broadcast %80 : vector<4x16x1xf32> to vector<4x16x8xf32>
    %82 = arith.mulf %77, %81 : vector<4x16x8xf32>
    "tpu.trace_start"() <{level = 10 : i32, message = "hqk,hkd->hqd"}> : () -> ()
    %cst_32 = arith.constant dense<0.000000e+00> : vector<4x16x8xf32>
    %83 = tpu.matmul %82, %69, %cst_32 {dimension_numbers = #tpu.dot_dimension_numbers<[2], [1], [1], [2], [0, 0, 0, 1, 1, 2], [0], [0]>} : vector<4x16x8xf32>, vector<4x8x8xf32>, vector<4x16x8xf32> -> vector<4x16x8xf32>
    "tpu.trace_stop"() : () -> ()
    %84 = vector.extract_strided_slice %83 {offsets = [0, 0, 0], sizes = [1, 16, 8], strides = [1, 1, 1]} : vector<4x16x8xf32> to vector<1x16x8xf32>
    %85 = vector.shape_cast %84 : vector<1x16x8xf32> to vector<16x8xf32>
    %86 = vector.extract_strided_slice %83 {offsets = [1, 0, 0], sizes = [1, 16, 8], strides = [1, 1, 1]} : vector<4x16x8xf32> to vector<1x16x8xf32>
    %87 = vector.shape_cast %86 : vector<1x16x8xf32> to vector<16x8xf32>
    %88 = vector.extract_strided_slice %83 {offsets = [2, 0, 0], sizes = [1, 16, 8], strides = [1, 1, 1]} : vector<4x16x8xf32> to vector<1x16x8xf32>
    %89 = vector.shape_cast %88 : vector<1x16x8xf32> to vector<16x8xf32>
    %90 = vector.extract_strided_slice %83 {offsets = [3, 0, 0], sizes = [1, 16, 8], strides = [1, 1, 1]} : vector<4x16x8xf32> to vector<1x16x8xf32>
    %91 = vector.shape_cast %90 : vector<1x16x8xf32> to vector<16x8xf32>
    %92 = tpu.concatenate %85, %87, %89, %91 in 1 : vector<16x8xf32>, vector<16x8xf32>, vector<16x8xf32>, vector<16x8xf32> -> vector<16x32xf32>
    %c0_33 = arith.constant 0 : index
    %c0_34 = arith.constant 0 : index
    %93 = vector.load %arg13[%c0_33, %c0_34] : memref<32x32xf32, #tpu.memory_space<vmem>>, vector<32x32xf32>
    %cst_35 = arith.constant dense<0.000000e+00> : vector<16x32xf32>
    %94 = tpu.matmul %92, %93, %cst_35 {dimension_numbers = #tpu.dot_dimension_numbers<[1], [0], [0], [1], [0, 0, 1, 1], [], []>} : vector<16x32xf32>, vector<32x32xf32>, vector<16x32xf32> -> vector<16x32xf32>
    %c0_36 = arith.constant 0 : index
    %c0_37 = arith.constant 0 : index
    %95 = vector.load %arg14[%c0_36, %c0_37] : memref<1x32xf32, #tpu.memory_space<vmem>>, vector<1x32xf32>
    %96 = vector.broadcast %95 : vector<1x32xf32> to vector<16x32xf32>
    %97 = arith.addf %94, %96 : vector<16x32xf32>
    %98 = arith.addf %1, %97 : vector<16x32xf32>
    %c0_38 = arith.constant 0 : index
    %c0_39 = arith.constant 0 : index
    %99 = vector.load %arg5[%c0_38, %c0_39] : memref<1x32xf32, #tpu.memory_space<vmem>>, vector<1x32xf32>
    %c0_40 = arith.constant 0 : index
    %c0_41 = arith.constant 0 : index
    %100 = vector.load %arg6[%c0_40, %c0_41] : memref<1x32xf32, #tpu.memory_space<vmem>>, vector<1x32xf32>
    %cst_42 = arith.constant dense<0.000000e+00> : vector<16xf32>
    %101 = vector.multi_reduction <add>, %98, %cst_42 [1] : vector<16x32xf32> to vector<16xf32>
    %102 = vector.shape_cast %101 : vector<16xf32> to vector<16x1xf32>
    %cst_43 = arith.constant 3.200000e+01 : f32
    %103 = vector.broadcast %cst_43 : f32 to vector<16x1xf32>
    %104 = arith.divf %102, %103 : vector<16x1xf32>
    %105 = vector.broadcast %104 : vector<16x1xf32> to vector<16x32xf32>
    %106 = arith.subf %98, %105 : vector<16x32xf32>
    %107 = arith.mulf %106, %106 : vector<16x32xf32>
    %cst_44 = arith.constant dense<0.000000e+00> : vector<16xf32>
    %108 = vector.multi_reduction <add>, %107, %cst_44 [1] : vector<16x32xf32> to vector<16xf32>
    %109 = vector.shape_cast %108 : vector<16xf32> to vector<16x1xf32>
    %cst_45 = arith.constant 3.100000e+01 : f32
    %110 = vector.broadcast %cst_45 : f32 to vector<16x1xf32>
    %111 = arith.divf %109, %110 : vector<16x1xf32>
    %112 = math.sqrt %111 : vector<16x1xf32>
    %113 = vector.broadcast %104 : vector<16x1xf32> to vector<16x32xf32>
    %114 = arith.subf %98, %113 : vector<16x32xf32>
    %115 = vector.broadcast %99 : vector<1x32xf32> to vector<16x32xf32>
    %116 = arith.mulf %115, %114 : vector<16x32xf32>
    %cst_46 = arith.constant 9.99999997E-7 : f32
    %117 = vector.broadcast %cst_46 : f32 to vector<16x1xf32>
    %118 = arith.addf %112, %117 : vector<16x1xf32>
    %119 = vector.broadcast %118 : vector<16x1xf32> to vector<16x32xf32>
    %120 = arith.divf %116, %119 : vector<16x32xf32>
    %121 = vector.broadcast %100 : vector<1x32xf32> to vector<16x32xf32>
    %122 = arith.addf %120, %121 : vector<16x32xf32>
    %c0_47 = arith.constant 0 : index
    %c0_48 = arith.constant 0 : index
    %123 = vector.load %arg15[%c0_47, %c0_48] : memref<32x512xf32, #tpu.memory_space<vmem>>, vector<32x512xf32>
    %cst_49 = arith.constant dense<0.000000e+00> : vector<16x512xf32>
    %124 = tpu.matmul %122, %123, %cst_49 {dimension_numbers = #tpu.dot_dimension_numbers<[1], [0], [0], [1], [0, 0, 1, 1], [], []>} : vector<16x32xf32>, vector<32x512xf32>, vector<16x512xf32> -> vector<16x512xf32>
    %c0_50 = arith.constant 0 : index
    %c0_51 = arith.constant 0 : index
    %125 = vector.load %arg16[%c0_50, %c0_51] : memref<1x512xf32, #tpu.memory_space<vmem>>, vector<1x512xf32>
    %126 = vector.broadcast %125 : vector<1x512xf32> to vector<16x512xf32>
    %127 = arith.addf %124, %126 : vector<16x512xf32>
    %cst_52 = arith.constant 0.000000e+00 : f32
    %128 = vector.broadcast %cst_52 : f32 to vector<16x512xf32>
    %129 = arith.maximumf %127, %128 : vector<16x512xf32>
    %c0_53 = arith.constant 0 : index
    %c0_54 = arith.constant 0 : index
    %130 = vector.load %arg17[%c0_53, %c0_54] : memref<512x32xf32, #tpu.memory_space<vmem>>, vector<512x32xf32>
    %cst_55 = arith.constant dense<0.000000e+00> : vector<16x32xf32>
    %131 = tpu.matmul %129, %130, %cst_55 {dimension_numbers = #tpu.dot_dimension_numbers<[1], [0], [0], [1], [0, 0, 1, 1], [], []>} : vector<16x512xf32>, vector<512x32xf32>, vector<16x32xf32> -> vector<16x32xf32>
    %c0_56 = arith.constant 0 : index
    %c0_57 = arith.constant 0 : index
    %132 = vector.load %arg18[%c0_56, %c0_57] : memref<1x32xf32, #tpu.memory_space<vmem>>, vector<1x32xf32>
    %133 = vector.broadcast %132 : vector<1x32xf32> to vector<16x32xf32>
    %134 = arith.addf %131, %133 : vector<16x32xf32>
    %135 = arith.addf %98, %134 : vector<16x32xf32>
    %c0_58 = arith.constant 0 : index
    %c0_59 = arith.constant 0 : index
    %c0_60 = arith.constant 0 : index
    %136 = vector.load %arg19[%c0_58, %c0_59, %c0_60] : memref<1x16x32xf32, #tpu.memory_space<vmem>>, vector<1x16x32xf32>
    %137 = vector.shape_cast %136 : vector<1x16x32xf32> to vector<16x32xf32>
    %138 = vector.shape_cast %135 : vector<16x32xf32> to vector<1x16x32xf32>
    tpu.vector_store %arg19[%c0_58, %c0_59, %c0_60], %138 {strides = array<i32>} : memref<1x16x32xf32, #tpu.memory_space<vmem>>, vector<1x16x32xf32>,
    return
  }
  func.func @transform_0(%arg0: i32) -> (i32, i32, i32) {
    %c0_i32 = arith.constant 0 : i32
    %c0_i32_0 = arith.constant 0 : i32
    %c0_i32_1 = arith.constant 0 : i32
    return %arg0, %c0_i32, %c0_i32_0 : i32, i32, i32
  }
  func.func @transform_1(%arg0: i32) -> (i32, i32, i32) {
    %c0_i32 = arith.constant 0 : i32
    %c0_i32_0 = arith.constant 0 : i32
    %c0_i32_1 = arith.constant 0 : i32
    return %arg0, %c0_i32, %c0_i32_0 : i32, i32, i32
  }
  func.func @transform_2(%arg0: i32) -> (i32, i32) {
    %c0_i32 = arith.constant 0 : i32
    %c0_i32_0 = arith.constant 0 : i32
    %c0_i32_1 = arith.constant 0 : i32
    return %c0_i32, %c0_i32_0 : i32, i32
  }
  func.func @transform_3(%arg0: i32) -> (i32, i32) {
    %c0_i32 = arith.constant 0 : i32
    %c0_i32_0 = arith.constant 0 : i32
    %c0_i32_1 = arith.constant 0 : i32
    return %c0_i32, %c0_i32_0 : i32, i32
  }
  func.func @transform_4(%arg0: i32) -> (i32, i32) {
    %c0_i32 = arith.constant 0 : i32
    %c0_i32_0 = arith.constant 0 : i32
    %c0_i32_1 = arith.constant 0 : i32
    return %c0_i32, %c0_i32_0 : i32, i32
  }
  func.func @transform_5(%arg0: i32) -> (i32, i32) {
    %c0_i32 = arith.constant 0 : i32
    %c0_i32_0 = arith.constant 0 : i32
    %c0_i32_1 = arith.constant 0 : i32
    return %c0_i32, %c0_i32_0 : i32, i32
  }
  func.func @transform_6(%arg0: i32) -> (i32, i32) {
    %c0_i32 = arith.constant 0 : i32
    %c0_i32_0 = arith.constant 0 : i32
    %c0_i32_1 = arith.constant 0 : i32
    return %c0_i32, %c0_i32_0 : i32, i32
  }
  func.func @transform_7(%arg0: i32) -> (i32, i32) {
    %c0_i32 = arith.constant 0 : i32
    %c0_i32_0 = arith.constant 0 : i32
    %c0_i32_1 = arith.constant 0 : i32
    return %c0_i32, %c0_i32_0 : i32, i32
  }
  func.func @transform_8(%arg0: i32) -> (i32, i32) {
    %c0_i32 = arith.constant 0 : i32
    %c0_i32_0 = arith.constant 0 : i32
    %c0_i32_1 = arith.constant 0 : i32
    return %c0_i32, %c0_i32_0 : i32, i32
  }
  func.func @transform_9(%arg0: i32) -> (i32, i32) {
    %c0_i32 = arith.constant 0 : i32
    %c0_i32_0 = arith.constant 0 : i32
    %c0_i32_1 = arith.constant 0 : i32
    return %c0_i32, %c0_i32_0 : i32, i32
  }
  func.func @transform_10(%arg0: i32) -> (i32, i32) {
    %c0_i32 = arith.constant 0 : i32
    %c0_i32_0 = arith.constant 0 : i32
    %c0_i32_1 = arith.constant 0 : i32
    return %c0_i32, %c0_i32_0 : i32, i32
  }
  func.func @transform_11(%arg0: i32) -> (i32, i32) {
    %c0_i32 = arith.constant 0 : i32
    %c0_i32_0 = arith.constant 0 : i32
    %c0_i32_1 = arith.constant 0 : i32
    return %c0_i32, %c0_i32_0 : i32, i32
  }
  func.func @transform_12(%arg0: i32) -> (i32, i32) {
    %c0_i32 = arith.constant 0 : i32
    %c0_i32_0 = arith.constant 0 : i32
    %c0_i32_1 = arith.constant 0 : i32
    return %c0_i32, %c0_i32_0 : i32, i32
  }
  func.func @transform_13(%arg0: i32) -> (i32, i32) {
    %c0_i32 = arith.constant 0 : i32
    %c0_i32_0 = arith.constant 0 : i32
    %c0_i32_1 = arith.constant 0 : i32
    return %c0_i32, %c0_i32_0 : i32, i32
  }
  func.func @transform_14(%arg0: i32) -> (i32, i32) {
    %c0_i32 = arith.constant 0 : i32
    %c0_i32_0 = arith.constant 0 : i32
    %c0_i32_1 = arith.constant 0 : i32
    return %c0_i32, %c0_i32_0 : i32, i32
  }
  func.func @transform_15(%arg0: i32) -> (i32, i32) {
    %c0_i32 = arith.constant 0 : i32
    %c0_i32_0 = arith.constant 0 : i32
    %c0_i32_1 = arith.constant 0 : i32
    return %c0_i32, %c0_i32_0 : i32, i32
  }
  func.func @transform_16(%arg0: i32) -> (i32, i32) {
    %c0_i32 = arith.constant 0 : i32
    %c0_i32_0 = arith.constant 0 : i32
    %c0_i32_1 = arith.constant 0 : i32
    return %c0_i32, %c0_i32_0 : i32, i32
  }
  func.func @transform_17(%arg0: i32) -> (i32, i32) {
    %c0_i32 = arith.constant 0 : i32
    %c0_i32_0 = arith.constant 0 : i32
    %c0_i32_1 = arith.constant 0 : i32
    return %c0_i32, %c0_i32_0 : i32, i32
  }
  func.func @transform_18(%arg0: i32) -> (i32, i32, i32) {
    %c0_i32 = arith.constant 0 : i32
    %c0_i32_0 = arith.constant 0 : i32
    %c0_i32_1 = arith.constant 0 : i32
    return %arg0, %c0_i32, %c0_i32_0 : i32, i32, i32
  }
}

</mosaic_0001>

<llo_original>
// kernel: brief_decoder_layer.1
$region0: #{brief_decoder_layer.1}
  #allocation0 [shape = 'u32[]', space=smem, size = 0x4, offset = 0x4, fixed_abs, tag = 'smem constant byte address 0x4 - core index']
  #allocation1 [shape = 'u32[144,128]{1,0:T(1,128)}', space=vmem, size = 0x12000, scoped, tag = 'internal scratch']
  %s0 = inlined_call_operand.vmem [shape: f32[2,16,32], index: 0, kind: input, shape index: {}]
  %s1 = inlined_call_operand.vmem [shape: f32[2,8,32], index: 1, kind: input, shape index: {}]
  %s2 = inlined_call_operand.vmem [shape: f32[1,32], index: 2, kind: input, shape index: {}]
  %s3 = inlined_call_operand.vmem [shape: f32[1,32], index: 3, kind: input, shape index: {}]
  %s4 = inlined_call_operand.vmem [shape: f32[1,32], index: 4, kind: input, shape index: {}]
  %s5 = inlined_call_operand.vmem [shape: f32[1,32], index: 5, kind: input, shape index: {}]
  %s6 = inlined_call_operand.vmem [shape: f32[32,32], index: 6, kind: input, shape index: {}]
  %s7 = inlined_call_operand.vmem [shape: f32[1,32], index: 7, kind: input, shape index: {}]
  %s8 = inlined_call_operand.vmem [shape: f32[32,32], index: 8, kind: input, shape index: {}]
  %s9 = inlined_call_operand.vmem [shape: f32[1,32], index: 9, kind: input, shape index: {}]
  %s10 = inlined_call_operand.vmem [shape: f32[32,32], index: 10, kind: input, shape index: {}]
  %s11 = inlined_call_operand.vmem [shape: f32[1,32], index: 11, kind: input, shape index: {}]
  %s12 = inlined_call_operand.vmem [shape: f32[32,32], index: 12, kind: input, shape index: {}]
  %s13 = inlined_call_operand.vmem [shape: f32[1,32], index: 13, kind: input, shape index: {}]
  %s14 = inlined_call_operand.vmem [shape: f32[32,512], index: 14, kind: input, shape index: {}]
  %s15 = inlined_call_operand.vmem [shape: f32[1,512], index: 15, kind: input, shape index: {}]
  %s16 = inlined_call_operand.vmem [shape: f32[512,32], index: 16, kind: input, shape index: {}]
  %s17 = inlined_call_operand.vmem [shape: f32[1,32], index: 17, kind: input, shape index: {}]
  %s18 = inlined_call_operand.hbm [shape: f32[2,16,32], index: 18, kind: output, shape index: {}]
  %s19 = sld [smem:[#allocation0]]
  $region105: #{brief_decoder_layer.1} parent=0
    _
  %s21 = ssub.s32 1, %s19
  %s22 = scalar_select 0, %s21, %s19
  $region1: #{brief_decoder_layer.1} parent=0
    #allocation2 [shape = 'u8[16384]{0}', space=vmem, size = 0x4000, scoped, tag = 'output window, operand 0']
    #allocation3 [shape = 's32[2]{0}', space=sflag, size = 0x8, scoped, tag = 'scoped memory for brief_decoder_layer.1']
    %23 = vsyncpa [#allocation3], 0
    %s24 = scalar_lea.sflag [#allocation3], 1
    %25 = vsyncpa %s24, 0
    loop: start=0, step=1, limit=4
    $region2: #{brief_decoder_layer.1} parent=1 // loop_pre_header
      _
    $region3: #{brief_decoder_layer.1} parent=1 // loop_header
      %s27 = sphi 0, %s31
      %p28 = scmp.ge.s32.totalorder %s27, 4
      %s37 = sphi 0, %s39
      %s40 = sphi 0, %s37
      %s41 = sphi 0, %s40
      %s57 = sphi 0, %s41
      %s63 = sphi 0, %s65
      %s66 = sphi 0, %s63
      %s67 = sphi 0, %s66
      %s83 = sphi 0, %s67
      %s87 = sphi 0, %s87
      %s89 = sphi 0, %s87
      %s90 = sphi 0, %s89
      %s104 = sphi 0, %s90
      %s108 = sphi 0, %s108
      %s110 = sphi 0, %s108
      %s111 = sphi 0, %s110
      %s125 = sphi 0, %s111
      %s129 = sphi 0, %s129
      %s131 = sphi 0, %s129
      %s132 = sphi 0, %s131
      %s146 = sphi 0, %s132
      %s150 = sphi 0, %s150
      %s152 = sphi 0, %s150
      %s153 = sphi 0, %s152
      %s167 = sphi 0, %s153
      %s171 = sphi 0, %s171
      %s173 = sphi 0, %s171
      %s174 = sphi 0, %s173
      %s188 = sphi 0, %s174
      %s192 = sphi 0, %s192
      %s194 = sphi 0, %s192
      %s195 = sphi 0, %s194
      %s209 = sphi 0, %s195
      %s213 = sphi 0, %s213
      %s215 = sphi 0, %s213
      %s216 = sphi 0, %s215
      %s230 = sphi 0, %s216
      %s234 = sphi 0, %s234
      %s236 = sphi 0, %s234
      %s237 = sphi 0, %s236
      %s251 = sphi 0, %s237
      %s255 = sphi 0, %s255
      %s257 = sphi 0, %s255
      %s258 = sphi 0, %s257
      %s272 = sphi 0, %s258
      %s276 = sphi 0, %s276
      %s278 = sphi 0, %s276
      %s279 = sphi 0, %s278
      %s293 = sphi 0, %s279
      %s297 = sphi 0, %s297
      %s299 = sphi 0, %s297
      %s300 = sphi 0, %s299
      %s314 = sphi 0, %s300
      %s318 = sphi 0, %s318
      %s320 = sphi 0, %s318
      %s321 = sphi 0, %s320
      %s335 = sphi 0, %s321
      %s339 = sphi 0, %s339
      %s341 = sphi 0, %s339
      %s342 = sphi 0, %s341
      %s356 = sphi 0, %s342
      %s360 = sphi 0, %s360
      %s362 = sphi 0, %s360
      %s363 = sphi 0, %s362
      %s377 = sphi 0, %s363
      %s381 = sphi 0, %s381
      %s383 = sphi 0, %s381
      %s384 = sphi 0, %s383
      %s398 = sphi 0, %s384
      %s402 = sphi 0, %s402
      %s404 = sphi 0, %s402
      %s405 = sphi 0, %s404
      %s419 = sphi 0, %s405
      %s425 = sphi 0, %s427
      %s428 = sphi 0, %s425
      %s429 = sphi 0, %s428
      %s445 = sphi 0, %s429
    $region4: #{brief_decoder_layer.1} parent=1 // loop_header_branch
      %30 = sbr.rel (%p28) target = $region8
    $region5: #{brief_decoder_layer.1} parent=1 // loop_body
      %s32 = ssub.s32 %s27, 1
      %s33 = ssub.s32 %s27, 2
      %s34 = sadd.s32 %s27, 1
      %s35 = ssub.s32 %s27, %s34
      %p36 = scmp.eq.s32.totalorder %s35, 0
      %s38 = sadd.s32 %s37, 1
      %s39 = scalar_select %p36, %s37, %s38
      %p42 = pneg %p36
      %p43 = scmp.eq.s32.totalorder %s27, 1
      %p44 = por %p42, %p43
      %p45 = scmp.ne.s32.totalorder %s37, %s40
      %p46 = scmp.eq.s32.totalorder %s27, 0
      %p47 = por %p45, %p46
      %p48 = scmp.ne.s32.totalorder %s37, %s40
      %p49 = scmp.eq.s32.totalorder %s32, 1
      %p50 = por %p48, %p49
      %p51 = scmp.ne.s32.totalorder %s40, %s41
      %p52 = scmp.eq.s32.totalorder %s32, 0
      %p53 = por %p51, %p52
      %p54 = scmp.ne.s32.totalorder %s40, %s41
      %p55 = scmp.eq.s32.totalorder %s33, 1
      %p56 = por %p54, %p55
      %p58 = scmp.ne.s32.totalorder %s41, %s57
      %p59 = scmp.eq.s32.totalorder %s33, 0
      %p60 = por %p58, %p59
      %s61 = ssub.s32 %s27, %s34
      %p62 = scmp.eq.s32.totalorder %s61, 0
      %s64 = sadd.s32 %s63, 1
      %s65 = scalar_select %p62, %s63, %s64
      %p68 = pneg %p62
      %p69 = scmp.eq.s32.totalorder %s27, 1
      %p70 = por %p68, %p69
      %p71 = scmp.ne.s32.totalorder %s63, %s66
      %p72 = scmp.eq.s32.totalorder %s27, 0
      %p73 = por %p71, %p72
      %p74 = scmp.ne.s32.totalorder %s63, %s66
      %p75 = scmp.eq.s32.totalorder %s32, 1
      %p76 = por %p74, %p75
      %p77 = scmp.ne.s32.totalorder %s66, %s67
      %p78 = scmp.eq.s32.totalorder %s32, 0
      %p79 = por %p77, %p78
      %p80 = scmp.ne.s32.totalorder %s66, %s67
      %p81 = scmp.eq.s32.totalorder %s33, 1
      %p82 = por %p80, %p81
      %p84 = scmp.ne.s32.totalorder %s67, %s83
      %p85 = scmp.eq.s32.totalorder %s33, 0
      %p86 = por %p84, %p85
      %s88 = sadd.s32 %s87, 1
      %p91 = scmp.eq.s32.totalorder %s27, 1
      %p92 = scmp.ne.s32.totalorder %s87, %s89
      %p93 = scmp.eq.s32.totalorder %s27, 0
      %p94 = por %p92, %p93
      %p95 = scmp.ne.s32.totalorder %s87, %s89
      %p96 = scmp.eq.s32.totalorder %s32, 1
      %p97 = por %p95, %p96
      %p98 = scmp.ne.s32.totalorder %s89, %s90
      %p99 = scmp.eq.s32.totalorder %s32, 0
      %p100 = por %p98, %p99
      %p101 = scmp.ne.s32.totalorder %s89, %s90
      %p102 = scmp.eq.s32.totalorder %s33, 1
      %p103 = por %p101, %p102
      %p105 = scmp.ne.s32.totalorder %s90, %s104
      %p106 = scmp.eq.s32.totalorder %s33, 0
      %p107 = por %p105, %p106
      %s109 = sadd.s32 %s108, 1
      %p112 = scmp.eq.s32.totalorder %s27, 1
      %p113 = scmp.ne.s32.totalorder %s108, %s110
      %p114 = scmp.eq.s32.totalorder %s27, 0
      %p115 = por %p113, %p114
      %p116 = scmp.ne.s32.totalorder %s108, %s110
      %p117 = scmp.eq.s32.totalorder %s32, 1
      %p118 = por %p116, %p117
      %p119 = scmp.ne.s32.totalorder %s110, %s111
      %p120 = scmp.eq.s32.totalorder %s32, 0
      %p121 = por %p119, %p120
      %p122 = scmp.ne.s32.totalorder %s110, %s111
      %p123 = scmp.eq.s32.totalorder %s33, 1
      %p124 = por %p122, %p123
      %p126 = scmp.ne.s32.totalorder %s111, %s125
      %p127 = scmp.eq.s32.totalorder %s33, 0
      %p128 = por %p126, %p127
      %s130 = sadd.s32 %s129, 1
      %p133 = scmp.eq.s32.totalorder %s27, 1
      %p134 = scmp.ne.s32.totalorder %s129, %s131
      %p135 = scmp.eq.s32.totalorder %s27, 0
      %p136 = por %p134, %p135
      %p137 = scmp.ne.s32.totalorder %s129, %s131
      %p138 = scmp.eq.s32.totalorder %s32, 1
      %p139 = por %p137, %p138
      %p140 = scmp.ne.s32.totalorder %s131, %s132
      %p141 = scmp.eq.s32.totalorder %s32, 0
      %p142 = por %p140, %p141
      %p143 = scmp.ne.s32.totalorder %s131, %s132
      %p144 = scmp.eq.s32.totalorder %s33, 1
      %p145 = por %p143, %p144
      %p147 = scmp.ne.s32.totalorder %s132, %s146
      %p148 = scmp.eq.s32.totalorder %s33, 0
      %p149 = por %p147, %p148
      %s151 = sadd.s32 %s150, 1
      %p154 = scmp.eq.s32.totalorder %s27, 1
      %p155 = scmp.ne.s32.totalorder %s150, %s152
      %p156 = scmp.eq.s32.totalorder %s27, 0
      %p157 = por %p155, %p156
      %p158 = scmp.ne.s32.totalorder %s150, %s152
      %p159 = scmp.eq.s32.totalorder %s32, 1
      %p160 = por %p158, %p159
      %p161 = scmp.ne.s32.totalorder %s152, %s153
      %p162 = scmp.eq.s32.totalorder %s32, 0
      %p163 = por %p161, %p162
      %p164 = scmp.ne.s32.totalorder %s152, %s153
      %p165 = scmp.eq.s32.totalorder %s33, 1
      %p166 = por %p164, %p165
      %p168 = scmp.ne.s32.totalorder %s153, %s167
      %p169 = scmp.eq.s32.totalorder %s33, 0
      %p170 = por %p168, %p169
      %s172 = sadd.s32 %s171, 1
      %p175 = scmp.eq.s32.totalorder %s27, 1
      %p176 = scmp.ne.s32.totalorder %s171, %s173
      %p177 = scmp.eq.s32.totalorder %s27, 0
      %p178 = por %p176, %p177
      %p179 = scmp.ne.s32.totalorder %s171, %s173
      %p180 = scmp.eq.s32.totalorder %s32, 1
      %p181 = por %p179, %p180
      %p182 = scmp.ne.s32.totalorder %s173, %s174
      %p183 = scmp.eq.s32.totalorder %s32, 0
      %p184 = por %p182, %p183
      %p185 = scmp.ne.s32.totalorder %s173, %s174
      %p186 = scmp.eq.s32.totalorder %s33, 1
      %p187 = por %p185, %p186
      %p189 = scmp.ne.s32.totalorder %s174, %s188
      %p190 = scmp.eq.s32.totalorder %s33, 0
      %p191 = por %p189, %p190
      %s193 = sadd.s32 %s192, 1
      %p196 = scmp.eq.s32.totalorder %s27, 1
      %p197 = scmp.ne.s32.totalorder %s192, %s194
      %p198 = scmp.eq.s32.totalorder %s27, 0
      %p199 = por %p197, %p198
      %p200 = scmp.ne.s32.totalorder %s192, %s194
      %p201 = scmp.eq.s32.totalorder %s32, 1
      %p202 = por %p200, %p201
      %p203 = scmp.ne.s32.totalorder %s194, %s195
      %p204 = scmp.eq.s32.totalorder %s32, 0
      %p205 = por %p203, %p204
      %p206 = scmp.ne.s32.totalorder %s194, %s195
      %p207 = scmp.eq.s32.totalorder %s33, 1
      %p208 = por %p206, %p207
      %p210 = scmp.ne.s32.totalorder %s195, %s209
      %p211 = scmp.eq.s32.totalorder %s33, 0
      %p212 = por %p210, %p211
      %s214 = sadd.s32 %s213, 1
      %p217 = scmp.eq.s32.totalorder %s27, 1
      %p218 = scmp.ne.s32.totalorder %s213, %s215
      %p219 = scmp.eq.s32.totalorder %s27, 0
      %p220 = por %p218, %p219
      %p221 = scmp.ne.s32.totalorder %s213, %s215
      %p222 = scmp.eq.s32.totalorder %s32, 1
      %p223 = por %p221, %p222
      %p224 = scmp.ne.s32.totalorder %s215, %s216
      %p225 = scmp.eq.s32.totalorder %s32, 0
      %p226 = por %p224, %p225
      %p227 = scmp.ne.s32.totalorder %s215, %s216
      %p228 = scmp.eq.s32.totalorder %s33, 1
      %p229 = por %p227, %p228
      %p231 = scmp.ne.s32.totalorder %s216, %s230
      %p232 = scmp.eq.s32.totalorder %s33, 0
      %p233 = por %p231, %p232
      %s235 = sadd.s32 %s234, 1
      %p238 = scmp.eq.s32.totalorder %s27, 1
      %p239 = scmp.ne.s32.totalorder %s234, %s236
      %p240 = scmp.eq.s32.totalorder %s27, 0
      %p241 = por %p239, %p240
      %p242 = scmp.ne.s32.totalorder %s234, %s236
      %p243 = scmp.eq.s32.totalorder %s32, 1
      %p244 = por %p242, %p243
      %p245 = scmp.ne.s32.totalorder %s236, %s237
      %p246 = scmp.eq.s32.totalorder %s32, 0
      %p247 = por %p245, %p246
      %p248 = scmp.ne.s32.totalorder %s236, %s237
      %p249 = scmp.eq.s32.totalorder %s33, 1
      %p250 = por %p248, %p249
      %p252 = scmp.ne.s32.totalorder %s237, %s251
      %p253 = scmp.eq.s32.totalorder %s33, 0
      %p254 = por %p252, %p253
      %s256 = sadd.s32 %s255, 1
      %p259 = scmp.eq.s32.totalorder %s27, 1
      %p260 = scmp.ne.s32.totalorder %s255, %s257
      %p261 = scmp.eq.s32.totalorder %s27, 0
      %p262 = por %p260, %p261
      %p263 = scmp.ne.s32.totalorder %s255, %s257
      %p264 = scmp.eq.s32.totalorder %s32, 1
      %p265 = por %p263, %p264
      %p266 = scmp.ne.s32.totalorder %s257, %s258
      %p267 = scmp.eq.s32.totalorder %s32, 0
      %p268 = por %p266, %p267
      %p269 = scmp.ne.s32.totalorder %s257, %s258
      %p270 = scmp.eq.s32.totalorder %s33, 1
      %p271 = por %p269, %p270
      %p273 = scmp.ne.s32.totalorder %s258, %s272
      %p274 = scmp.eq.s32.totalorder %s33, 0
      %p275 = por %p273, %p274
      %s277 = sadd.s32 %s276, 1
      %p280 = scmp.eq.s32.totalorder %s27, 1
      %p281 = scmp.ne.s32.totalorder %s276, %s278
      %p282 = scmp.eq.s32.totalorder %s27, 0
      %p283 = por %p281, %p282
      %p284 = scmp.ne.s32.totalorder %s276, %s278
      %p285 = scmp.eq.s32.totalorder %s32, 1
      %p286 = por %p284, %p285
      %p287 = scmp.ne.s32.totalorder %s278, %s279
      %p288 = scmp.eq.s32.totalorder %s32, 0
      %p289 = por %p287, %p288
      %p290 = scmp.ne.s32.totalorder %s278, %s279
      %p291 = scmp.eq.s32.totalorder %s33, 1
      %p292 = por %p290, %p291
      %p294 = scmp.ne.s32.totalorder %s279, %s293
      %p295 = scmp.eq.s32.totalorder %s33, 0
      %p296 = por %p294, %p295
      %s298 = sadd.s32 %s297, 1
      %p301 = scmp.eq.s32.totalorder %s27, 1
      %p302 = scmp.ne.s32.totalorder %s297, %s299
      %p303 = scmp.eq.s32.totalorder %s27, 0
      %p304 = por %p302, %p303
      %p305 = scmp.ne.s32.totalorder %s297, %s299
      %p306 = scmp.eq.s32.totalorder %s32, 1
      %p307 = por %p305, %p306
      %p308 = scmp.ne.s32.totalorder %s299, %s300
      %p309 = scmp.eq.s32.totalorder %s32, 0
      %p310 = por %p308, %p309
      %p311 = scmp.ne.s32.totalorder %s299, %s300
      %p312 = scmp.eq.s32.totalorder %s33, 1
      %p313 = por %p311, %p312
      %p315 = scmp.ne.s32.totalorder %s300, %s314
      %p316 = scmp.eq.s32.totalorder %s33, 0
      %p317 = por %p315, %p316
      %s319 = sadd.s32 %s318, 1
      %p322 = scmp.eq.s32.totalorder %s27, 1
      %p323 = scmp.ne.s32.totalorder %s318, %s320
      %p324 = scmp.eq.s32.totalorder %s27, 0
      %p325 = por %p323, %p324
      %p326 = scmp.ne.s32.totalorder %s318, %s320
      %p327 = scmp.eq.s32.totalorder %s32, 1
      %p328 = por %p326, %p327
      %p329 = scmp.ne.s32.totalorder %s320, %s321
      %p330 = scmp.eq.s32.totalorder %s32, 0
      %p331 = por %p329, %p330
      %p332 = scmp.ne.s32.totalorder %s320, %s321
      %p333 = scmp.eq.s32.totalorder %s33, 1
      %p334 = por %p332, %p333
      %p336 = scmp.ne.s32.totalorder %s321, %s335
      %p337 = scmp.eq.s32.totalorder %s33, 0
      %p338 = por %p336, %p337
      %s340 = sadd.s32 %s339, 1
      %p343 = scmp.eq.s32.totalorder %s27, 1
      %p344 = scmp.ne.s32.totalorder %s339, %s341
      %p345 = scmp.eq.s32.totalorder %s27, 0
      %p346 = por %p344, %p345
      %p347 = scmp.ne.s32.totalorder %s339, %s341
      %p348 = scmp.eq.s32.totalorder %s32, 1
      %p349 = por %p347, %p348
      %p350 = scmp.ne.s32.totalorder %s341, %s342
      %p351 = scmp.eq.s32.totalorder %s32, 0
      %p352 = por %p350, %p351
      %p353 = scmp.ne.s32.totalorder %s341, %s342
      %p354 = scmp.eq.s32.totalorder %s33, 1
      %p355 = por %p353, %p354
      %p357 = scmp.ne.s32.totalorder %s342, %s356
      %p358 = scmp.eq.s32.totalorder %s33, 0
      %p359 = por %p357, %p358
      %s361 = sadd.s32 %s360, 1
      %p364 = scmp.eq.s32.totalorder %s27, 1
      %p365 = scmp.ne.s32.totalorder %s360, %s362
      %p366 = scmp.eq.s32.totalorder %s27, 0
      %p367 = por %p365, %p366
      %p368 = scmp.ne.s32.totalorder %s360, %s362
      %p369 = scmp.eq.s32.totalorder %s32, 1
      %p370 = por %p368, %p369
      %p371 = scmp.ne.s32.totalorder %s362, %s363
      %p372 = scmp.eq.s32.totalorder %s32, 0
      %p373 = por %p371, %p372
      %p374 = scmp.ne.s32.totalorder %s362, %s363
      %p375 = scmp.eq.s32.totalorder %s33, 1
      %p376 = por %p374, %p375
      %p378 = scmp.ne.s32.totalorder %s363, %s377
      %p379 = scmp.eq.s32.totalorder %s33, 0
      %p380 = por %p378, %p379
      %s382 = sadd.s32 %s381, 1
      %p385 = scmp.eq.s32.totalorder %s27, 1
      %p386 = scmp.ne.s32.totalorder %s381, %s383
      %p387 = scmp.eq.s32.totalorder %s27, 0
      %p388 = por %p386, %p387
      %p389 = scmp.ne.s32.totalorder %s381, %s383
      %p390 = scmp.eq.s32.totalorder %s32, 1
      %p391 = por %p389, %p390
      %p392 = scmp.ne.s32.totalorder %s383, %s384
      %p393 = scmp.eq.s32.totalorder %s32, 0
      %p394 = por %p392, %p393
      %p395 = scmp.ne.s32.totalorder %s383, %s384
      %p396 = scmp.eq.s32.totalorder %s33, 1
      %p397 = por %p395, %p396
      %p399 = scmp.ne.s32.totalorder %s384, %s398
      %p400 = scmp.eq.s32.totalorder %s33, 0
      %p401 = por %p399, %p400
      %s403 = sadd.s32 %s402, 1
      %p406 = scmp.eq.s32.totalorder %s27, 1
      %p407 = scmp.ne.s32.totalorder %s402, %s404
      %p408 = scmp.eq.s32.totalorder %s27, 0
      %p409 = por %p407, %p408
      %p410 = scmp.ne.s32.totalorder %s402, %s404
      %p411 = scmp.eq.s32.totalorder %s32, 1
      %p412 = por %p410, %p411
      %p413 = scmp.ne.s32.totalorder %s404, %s405
      %p414 = scmp.eq.s32.totalorder %s32, 0
      %p415 = por %p413, %p414
      %p416 = scmp.ne.s32.totalorder %s404, %s405
      %p417 = scmp.eq.s32.totalorder %s33, 1
      %p418 = por %p416, %p417
      %p420 = scmp.ne.s32.totalorder %s405, %s419
      %p421 = scmp.eq.s32.totalorder %s33, 0
      %p422 = por %p420, %p421
      %s423 = ssub.s32 %s27, %s34
      %p424 = scmp.eq.s32.totalorder %s423, 0
      %s426 = sadd.s32 %s425, 1
      %s427 = scalar_select %p424, %s425, %s426
      %p430 = pneg %p424
      %p431 = scmp.eq.s32.totalorder %s27, 1
      %p432 = por %p430, %p431
      %p433 = scmp.ne.s32.totalorder %s425, %s428
      %p434 = scmp.eq.s32.totalorder %s27, 0
      %p435 = por %p433, %p434
      %p436 = scmp.ne.s32.totalorder %s425, %s428
      %p437 = scmp.eq.s32.totalorder %s32, 1
      %p438 = por %p436, %p437
      %p439 = scmp.ne.s32.totalorder %s428, %s429
      %p440 = scmp.eq.s32.totalorder %s32, 0
      %p441 = por %p439, %p440
      %p442 = scmp.ne.s32.totalorder %s428, %s429
      %p443 = scmp.eq.s32.totalorder %s33, 1
      %p444 = por %p442, %p443
      %p446 = scmp.ne.s32.totalorder %s429, %s445
      %p447 = scmp.eq.s32.totalorder %s33, 0
      %p448 = por %p446, %p447
      %p449 = scmp.le.s32.totalorder 1, %s27
      %p450 = scmp.lt.s32.totalorder %s27, 3
      %p451 = pnand %p449, %p450
      %p452 = pneg %p451
      // Predicated region
      $region9: #{brief_decoder_layer.1} parent=5 // pred_check
        _
      $region10: #{brief_decoder_layer.1} parent=5 // pred_check_branch
        %454 = sbr.rel (%p451) target = $region12
      $region11: #{brief_decoder_layer.1} parent=5 // pred_region
        %s455 = ssub.s32 %s27, 1
        // Predicated region
        $region13: #{brief_decoder_layer.1} parent=11 // pred_check
          %p456 = pneg %p100
        $region14: #{brief_decoder_layer.1} parent=11 // pred_check_branch
          %458 = sbr.rel (%p456) target = $region16
        $region15: #{brief_decoder_layer.1} parent=11 // pred_region
          _
        $region16: #{brief_decoder_layer.1} parent=11 // pred_fallthru
          _
        // Predicated region
        $region17: #{brief_decoder_layer.1} parent=11 // pred_check
          %p459 = pneg %p121
        $region18: #{brief_decoder_layer.1} parent=11 // pred_check_branch
          %461 = sbr.rel (%p459) target = $region20
        $region19: #{brief_decoder_layer.1} parent=11 // pred_region
          _
        $region20: #{brief_decoder_layer.1} parent=11 // pred_fallthru
          _
        // Predicated region
        $region21: #{brief_decoder_layer.1} parent=11 // pred_check
          %p462 = pneg %p142
        $region22: #{brief_decoder_layer.1} parent=11 // pred_check_branch
          %464 = sbr.rel (%p462) target = $region24
        $region23: #{brief_decoder_layer.1} parent=11 // pred_region
          _
        $region24: #{brief_decoder_layer.1} parent=11 // pred_fallthru
          _
        // Predicated region
        $region25: #{brief_decoder_layer.1} parent=11 // pred_check
          %p465 = pneg %p163
        $region26: #{brief_decoder_layer.1} parent=11 // pred_check_branch
          %467 = sbr.rel (%p465) target = $region28
        $region27: #{brief_decoder_layer.1} parent=11 // pred_region
          _
        $region28: #{brief_decoder_layer.1} parent=11 // pred_fallthru
          _
        // Predicated region
        $region29: #{brief_decoder_layer.1} parent=11 // pred_check
          %p468 = pneg %p184
        $region30: #{brief_decoder_layer.1} parent=11 // pred_check_branch
          %470 = sbr.rel (%p468) target = $region32
        $region31: #{brief_decoder_layer.1} parent=11 // pred_region
          _
        $region32: #{brief_decoder_layer.1} parent=11 // pred_fallthru
          _
        // Predicated region
        $region33: #{brief_decoder_layer.1} parent=11 // pred_check
          %p471 = pneg %p205
        $region34: #{brief_decoder_layer.1} parent=11 // pred_check_branch
          %473 = sbr.rel (%p471) target = $region36
        $region35: #{brief_decoder_layer.1} parent=11 // pred_region
          _
        $region36: #{brief_decoder_layer.1} parent=11 // pred_fallthru
          _
        // Predicated region
        $region37: #{brief_decoder_layer.1} parent=11 // pred_check
          %p474 = pneg %p226
        $region38: #{brief_decoder_layer.1} parent=11 // pred_check_branch
          %476 = sbr.rel (%p474) target = $region40
        $region39: #{brief_decoder_layer.1} parent=11 // pred_region
          _
        $region40: #{brief_decoder_layer.1} parent=11 // pred_fallthru
          _
        // Predicated region
        $region41: #{brief_decoder_layer.1} parent=11 // pred_check
          %p477 = pneg %p247
        $region42: #{brief_decoder_layer.1} parent=11 // pred_check_branch
          %479 = sbr.rel (%p477) target = $region44
        $region43: #{brief_decoder_layer.1} parent=11 // pred_region
          _
        $region44: #{brief_decoder_layer.1} parent=11 // pred_fallthru
          _
        // Predicated region
        $region45: #{brief_decoder_layer.1} parent=11 // pred_check
          %p480 = pneg %p268
        $region46: #{brief_decoder_layer.1} parent=11 // pred_check_branch
          %482 = sbr.rel (%p480) target = $region48
        $region47: #{brief_decoder_layer.1} parent=11 // pred_region
          _
        $region48: #{brief_decoder_layer.1} parent=11 // pred_fallthru
          _
        // Predicated region
        $region49: #{brief_decoder_layer.1} parent=11 // pred_check
          %p483 = pneg %p289
        $region50: #{brief_decoder_layer.1} parent=11 // pred_check_branch
          %485 = sbr.rel (%p483) target = $region52
        $region51: #{brief_decoder_layer.1} parent=11 // pred_region
          _
        $region52: #{brief_decoder_layer.1} parent=11 // pred_fallthru
          _
        // Predicated region
        $region53: #{brief_decoder_layer.1} parent=11 // pred_check
          %p486 = pneg %p310
        $region54: #{brief_decoder_layer.1} parent=11 // pred_check_branch
          %488 = sbr.rel (%p486) target = $region56
        $region55: #{brief_decoder_layer.1} parent=11 // pred_region
          _
        $region56: #{brief_decoder_layer.1} parent=11 // pred_fallthru
          _
        // Predicated region
        $region57: #{brief_decoder_layer.1} parent=11 // pred_check
          %p489 = pneg %p331
        $region58: #{brief_decoder_layer.1} parent=11 // pred_check_branch
          %491 = sbr.rel (%p489) target = $region60
        $region59: #{brief_decoder_layer.1} parent=11 // pred_region
          _
        $region60: #{brief_decoder_layer.1} parent=11 // pred_fallthru
          _
        // Predicated region
        $region61: #{brief_decoder_layer.1} parent=11 // pred_check
          %p492 = pneg %p352
        $region62: #{brief_decoder_layer.1} parent=11 // pred_check_branch
          %494 = sbr.rel (%p492) target = $region64
        $region63: #{brief_decoder_layer.1} parent=11 // pred_region
          _
        $region64: #{brief_decoder_layer.1} parent=11 // pred_fallthru
          _
        // Predicated region
        $region65: #{brief_decoder_layer.1} parent=11 // pred_check
          %p495 = pneg %p373
        $region66: #{brief_decoder_layer.1} parent=11 // pred_check_branch
          %497 = sbr.rel (%p495) target = $region68
        $region67: #{brief_decoder_layer.1} parent=11 // pred_region
          _
        $region68: #{brief_decoder_layer.1} parent=11 // pred_fallthru
          _
        // Predicated region
        $region69: #{brief_decoder_layer.1} parent=11 // pred_check
          %p498 = pneg %p394
        $region70: #{brief_decoder_layer.1} parent=11 // pred_check_branch
          %500 = sbr.rel (%p498) target = $region72
        $region71: #{brief_decoder_layer.1} parent=11 // pred_region
          _
        $region72: #{brief_decoder_layer.1} parent=11 // pred_fallthru
          _
        // Predicated region
        $region73: #{brief_decoder_layer.1} parent=11 // pred_check
          %p501 = pneg %p415
        $region74: #{brief_decoder_layer.1} parent=11 // pred_check_branch
          %503 = sbr.rel (%p501) target = $region76
        $region75: #{brief_decoder_layer.1} parent=11 // pred_region
          _
        $region76: #{brief_decoder_layer.1} parent=11 // pred_fallthru
          _
      $region12: #{brief_decoder_layer.1} parent=5 // pred_fallthru
        _
      %p504 = scmp.lt.s32.totalorder %s27, 2
      // Predicated region
      $region77: #{brief_decoder_layer.1} parent=5 // pred_check
        %p505 = pneg %p504
      $region78: #{brief_decoder_layer.1} parent=5 // pred_check_branch
        %507 = sbr.rel (%p505) target = $region80
      $region79: #{brief_decoder_layer.1} parent=5 // pred_region
        // Predicated region
        $region81: #{brief_decoder_layer.1} parent=79 // pred_check
          %p508 = pneg %p47
        $region82: #{brief_decoder_layer.1} parent=79 // pred_check_branch
          %510 = sbr.rel (%p508) target = $region84
        $region83: #{brief_decoder_layer.1} parent=79 // pred_region
          %p511 = scmp.lt.s32.totalorder %s27, 1
          %s512 = scalar_select %p511, %s27, 1
          %s513 = smul.addr %s512, 2
          %s514 = smul.addr %s513, 8
          %s515 = scalar_lea.vmem %s0, %s514
        $region84: #{brief_decoder_layer.1} parent=79 // pred_fallthru
          _
        // Predicated region
        $region85: #{brief_decoder_layer.1} parent=79 // pred_check
          %p516 = pneg %p73
        $region86: #{brief_decoder_layer.1} parent=79 // pred_check_branch
          %518 = sbr.rel (%p516) target = $region88
        $region87: #{brief_decoder_layer.1} parent=79 // pred_region
          %p519 = scmp.lt.s32.totalorder %s27, 1
          %s520 = scalar_select %p519, %s27, 1
          %s521 = smul.addr %s520, 8
          %s522 = scalar_lea.vmem %s1, %s521
        $region88: #{brief_decoder_layer.1} parent=79 // pred_fallthru
          _
      $region80: #{brief_decoder_layer.1} parent=5 // pred_fallthru
        _
      %p523 = scmp.le.s32.totalorder 1, %s27
      %p524 = scmp.lt.s32.totalorder %s27, 3
      %p525 = pnand %p523, %p524
      %p526 = pneg %p525
      // Predicated region
      $region89: #{brief_decoder_layer.1} parent=5 // pred_check
        _
      $region90: #{brief_decoder_layer.1} parent=5 // pred_check_branch
        %528 = sbr.rel (%p525) target = $region92
      $region91: #{brief_decoder_layer.1} parent=5 // pred_region
        %s529 = ssub.s32 %s27, 1
        %p530 = scmp.lt.s32.totalorder %s32, 1
        %s531 = scalar_select %p530, %s32, 1
        %s532 = smul.addr %s531, 2
        %s533 = smul.addr %s532, 8
        %s534 = scalar_lea.vmem %s0, %s533
        %p535 = pneg %p53
        %p536 = pneg %p50
        %p537 = scmp.lt.s32.totalorder %s32, 1
        %s538 = scalar_select %p537, %s32, 1
        %s539 = smul.addr %s538, 8
        %s540 = scalar_lea.vmem %s1, %s539
        %p541 = pneg %p79
        %p542 = pneg %p76
        %p543 = pneg %p100
        %p544 = pneg %p97
        %p545 = pneg %p121
        %p546 = pneg %p118
        %p547 = pneg %p142
        %p548 = pneg %p139
        %p549 = pneg %p163
        %p550 = pneg %p160
        %p551 = pneg %p184
        %p552 = pneg %p181
        %p553 = pneg %p205
        %p554 = pneg %p202
        %p555 = pneg %p226
        %p556 = pneg %p223
        %p557 = pneg %p247
        %p558 = pneg %p244
        %p559 = pneg %p268
        %p560 = pneg %p265
        %p561 = pneg %p289
        %p562 = pneg %p286
        %p563 = pneg %p310
        %p564 = pneg %p307
        %p565 = pneg %p331
        %p566 = pneg %p328
        %p567 = pneg %p352
        %p568 = pneg %p349
        %p569 = pneg %p373
        %p570 = pneg %p370
        %p571 = pneg %p394
        %p572 = pneg %p391
        %p573 = pneg %p415
        %p574 = pneg %p412
        %p575 = pneg %p441
        %p576 = pneg %p438
        %s577 = sand.u32 %s428, 1
        %s578 = scalar_lea.sflag [#allocation3], %s577
        %s579 = sand.u32 %s428, 1
        %s580 = smul.addr %s579, 16
        %s581 = scalar_lea.vmem [#allocation2], %s580
        %p582 = scmp.lt.s32.totalorder %s32, 1
        %s583 = scalar_select %p582, %s32, 1
        %s584 = smul.addr %s583, 2
        %s585 = smul.addr %s584, 8
        %s586 = scalar_lea.vmem %s0, %s585
        %p587 = scmp.lt.s32.totalorder %s32, 1
        %s588 = scalar_select %p587, %s32, 1
        %s589 = smul.addr %s588, 8
        %s590 = scalar_lea.vmem %s1, %s589
        %v591 = vld [vmem:[%s586] sm:$0xff]
        %v592 = vld [vmem:[%s586 + $0x8] sm:$0xff]
        %v593 = vld [vmem:[%s590] sm:$0xff]
        %v594 = vld [vmem:[%s2] sm:$0x1]
        %v595 = vld [vmem:[%s3] sm:$0x1]
        %vm596 = vcmask 261120
        %v597 = vsel %vm596, %v591, 0.0
        %598 = vadd.xlane.f32.xlu0 %v597
        %v599 = vpop.xlane.xlu0 %598
        %v600 = vsel %vm596, %v592, 0.0
        %601 = vadd.xlane.f32.xlu0 %v600
        %v602 = vpop.xlane.xlu0 %601
        %v603 = vrcp.pop 32.0
        %v604 = vmul.f32 %v599, %v603
        %v605 = vmul.f32 %v602, %v603
        %v606 = vsub.f32 %v591, %v604
        %v607 = vsub.f32 %v592, %v605
        %v608 = vmul.f32 %v606, %v606
        %v609 = vmul.f32 %v607, %v607
        %v610 = vsel %vm596, %v608, 0.0
        %611 = vadd.xlane.f32.xlu0 %v610
        %v612 = vpop.xlane.xlu0 %611
        %v613 = vsel %vm596, %v609, 0.0
        %614 = vadd.xlane.f32.xlu0 %v613
        %v615 = vpop.xlane.xlu0 %614
        %v616 = vrcp.pop 31.0
        %v617 = vmul.f32 %v612, %v616
        %v618 = vmul.f32 %v615, %v616
        %v619 = vrsqrt.pop %v617
        %v620 = vmul.f32 %v617, %v619
        %vm621 = vcmp.eq.f32.partialorder %v617, inf
        %v622 = vsel %vm621, %v617, %v620
        %vm623 = vcmp.eq.f32.partialorder %v617, 0.0
        %v624 = vand.u32 %v617, 2147483648
        %v625 = vsel %vm623, %v624, %v622
        %v626 = vrsqrt.pop %v618
        %v627 = vmul.f32 %v618, %v626
        %vm628 = vcmp.eq.f32.partialorder %v618, inf
        %v629 = vsel %vm628, %v618, %v627
        %vm630 = vcmp.eq.f32.partialorder %v618, 0.0
        %v631 = vand.u32 %v618, 2147483648
        %v632 = vsel %vm630, %v631, %v629
        %v634 = vlaneseq
        %v635 = vshrl.u32 %v634, 7
        %v636 = vsub.s32 0, %v635
        %v637 = vrot.slane %v594, %v636
        %v639 = vmul.f32 %v637, %v606
        %v640 = vmul.f32 %v637, %v607
        %v641 = vadd.f32 %v625, 1e-06
        %v642 = vadd.f32 %v632, 1e-06
        %v643 = vrcp.pop %v641
        %v644 = vmul.f32 %v639, %v643
        %v645 = vrcp.pop %v642
        %v646 = vmul.f32 %v640, %v645
        %v648 = vlaneseq
        %v649 = vshrl.u32 %v648, 7
        %v650 = vsub.s32 0, %v649
        %v651 = vrot.slane %v595, %v650
        %v653 = vadd.f32 %v644, %v651
        %v654 = vadd.f32 %v646, %v651
        %v655 = vld [vmem:[%s6] sm:$0xff]
        %v656 = vld [vmem:[%s6 + $0x8] sm:$0xff]
        %v657 = vld [vmem:[%s6 + $0x10] sm:$0xff]
        %v658 = vld [vmem:[%s6 + $0x18] sm:$0xff]
        %v659 = vld [vmem:[%s7] sm:$0x1]
        %v661 = vlaneseq
        %v662 = vshrl.u32 %v661, 7
        %v663 = vsub.s32 0, %v662
        %v664 = vrot.slane %v659, %v663
        %v667 = vsel %vm596, %v653, 0
        %v670 = vsel %vm596, %v654, 0
        %672 = vmatprep.subr.mxu0 0.0
        %673 = vmatpush1.msra.mxu0 0.0
        %674 = vmatprep.subr.mxu0 0.0
        %675 = vmatpush1.msra.mxu0 0.0
        %676 = vmatprep.subr.mxu0 0.0
        %677 = vmatpush1.msra.mxu0 0.0
        %678 = vmatprep.subr.mxu0 0.0
        %679 = vmatpush1.msra.mxu0 0.0
        %680 = vmatprep.subr.mxu0 0.0
        %681 = vmatpush1.msra.mxu0 0.0
        %682 = vmatprep.subr.mxu0 0.0
        %683 = vmatpush1.msra.mxu0 0.0
        %684 = vmatprep.subr.mxu0 0.0
        %685 = vmatpush1.msra.mxu0 0.0
        %686 = vmatprep.subr.mxu0 0.0
        %687 = vmatpush1.msra.mxu0 0.0
        %688 = vmatprep.subr.mxu0 0.0
        %689 = vmatpush1.msra.mxu0 0.0
        %690 = vmatprep.subr.mxu0 0.0
        %691 = vmatpush1.msra.mxu0 0.0
        %692 = vmatprep.subr.mxu0 0.0
        %693 = vmatpush1.msra.mxu0 0.0
        %694 = vmatprep.subr.mxu0 0.0
        %695 = vmatpush1.msra.mxu0 0.0
        %696 = vmatprep.subr.mxu0 0.0
        %697 = vmatpush1.msra.mxu0 %v658
        %698 = vmatprep.subr.mxu0 0.0
        %699 = vmatpush1.msra.mxu0 %v657
        %700 = vmatprep.subr.mxu0 0.0
        %701 = vmatpush1.msra.mxu0 %v656
        %702 = vmatprep.subr.mxu0 0.0
        %703 = vmatpush1.msra.mxu0 %v655
        %704 = vmatprep.subr.mxu0 0.0
        %705 = vmatpush2.msra.mxu0 0.0
        %706 = vmatprep.subr.mxu0 0.0
        %707 = vmatpush2.msra.mxu0 0.0
        %708 = vmatprep.subr.mxu0 0.0
        %709 = vmatpush2.msra.mxu0 0.0
        %710 = vmatprep.subr.mxu0 0.0
        %711 = vmatpush2.msra.mxu0 0.0
        %712 = vmatprep.subr.mxu0 0.0
        %713 = vmatpush2.msra.mxu0 0.0
        %714 = vmatprep.subr.mxu0 0.0
        %715 = vmatpush2.msra.mxu0 0.0
        %716 = vmatprep.subr.mxu0 0.0
        %717 = vmatpush2.msra.mxu0 0.0
        %718 = vmatprep.subr.mxu0 0.0
        %719 = vmatpush2.msra.mxu0 0.0
        %720 = vmatprep.subr.mxu0 0.0
        %721 = vmatpush2.msra.mxu0 0.0
        %722 = vmatprep.subr.mxu0 0.0
        %723 = vmatpush2.msra.mxu0 0.0
        %724 = vmatprep.subr.mxu0 0.0
        %725 = vmatpush2.msra.mxu0 0.0
        %726 = vmatprep.subr.mxu0 0.0
        %727 = vmatpush2.msra.mxu0 0.0
        %728 = vmatprep.subr.mxu0 0.0
        %729 = vmatpush2.msra.mxu0 0.0
        %730 = vmatprep.subr.mxu0 0.0
        %731 = vmatpush2.msra.mxu0 0.0
        %732 = vmatprep.subr.mxu0 0.0
        %733 = vmatpush2.msra.mxu0 0.0
        %734 = vmatprep.subr.mxu0 0.0
        %735 = vmatpush2.msra.mxu0 0.0
        %736 = vmatprep.mubr.f32.mxu0 0.0
        %737 = vmatmul.mubr.f32.gmra.mxu0 %v667
        %v738 = vpop.f32.mrf.mxu0
        %v739 = vadd.f32 %v664, %v738
        %v740 = vpop.f32.mrf.mxu0
        %741 = vmatprep.mubr.f32.mxu0 0.0
        %742 = vmatmul.mubr.f32.gmra.mxu0 %v670
        %v743 = vpop.f32.mrf.mxu0
        %v744 = vadd.f32 %v664, %v743
        %v745 = vpop.f32.mrf.mxu0
        %746 = vdwg.mxu0
        %v747 = vld [vmem:[%s8] sm:$0xff]
        %v748 = vld [vmem:[%s8 + $0x8] sm:$0xff]
        %v749 = vld [vmem:[%s8 + $0x10] sm:$0xff]
        %v750 = vld [vmem:[%s8 + $0x18] sm:$0xff]
        %v751 = vld [vmem:[%s9] sm:$0x1]
        %v753 = vlaneseq
        %v754 = vshrl.u32 %v753, 7
        %v755 = vsub.s32 0, %v754
        %v756 = vrot.slane %v751, %v755
        %v759 = vsel %vm596, %v593, 0
        %761 = vmatprep.subr.mxu0 0.0
        %762 = vmatpush1.msra.mxu0 0.0
        %763 = vmatprep.subr.mxu0 0.0
        %764 = vmatpush1.msra.mxu0 0.0
        %765 = vmatprep.subr.mxu0 0.0
        %766 = vmatpush1.msra.mxu0 0.0
        %767 = vmatprep.subr.mxu0 0.0
        %768 = vmatpush1.msra.mxu0 0.0
        %769 = vmatprep.subr.mxu0 0.0
        %770 = vmatpush1.msra.mxu0 0.0
        %771 = vmatprep.subr.mxu0 0.0
        %772 = vmatpush1.msra.mxu0 0.0
        %773 = vmatprep.subr.mxu0 0.0
        %774 = vmatpush1.msra.mxu0 0.0
        %775 = vmatprep.subr.mxu0 0.0
        %776 = vmatpush1.msra.mxu0 0.0
        %777 = vmatprep.subr.mxu0 0.0
        %778 = vmatpush1.msra.mxu0 0.0
        %779 = vmatprep.subr.mxu0 0.0
        %780 = vmatpush1.msra.mxu0 0.0
        %781 = vmatprep.subr.mxu0 0.0
        %782 = vmatpush1.msra.mxu0 0.0
        %783 = vmatprep.subr.mxu0 0.0
        %784 = vmatpush1.msra.mxu0 0.0
        %785 = vmatprep.subr.mxu0 0.0
        %786 = vmatpush1.msra.mxu0 %v750
        %787 = vmatprep.subr.mxu0 0.0
        %788 = vmatpush1.msra.mxu0 %v749
        %789 = vmatprep.subr.mxu0 0.0
        %790 = vmatpush1.msra.mxu0 %v748
        %791 = vmatprep.subr.mxu0 0.0
        %792 = vmatpush1.msra.mxu0 %v747
        %793 = vmatprep.subr.mxu0 0.0
        %794 = vmatpush2.msra.mxu0 0.0
        %795 = vmatprep.subr.mxu0 0.0
        %796 = vmatpush2.msra.mxu0 0.0
        %797 = vmatprep.subr.mxu0 0.0
        %798 = vmatpush2.msra.mxu0 0.0
        %799 = vmatprep.subr.mxu0 0.0
        %800 = vmatpush2.msra.mxu0 0.0
        %801 = vmatprep.subr.mxu0 0.0
        %802 = vmatpush2.msra.mxu0 0.0
        %803 = vmatprep.subr.mxu0 0.0
        %804 = vmatpush2.msra.mxu0 0.0
        %805 = vmatprep.subr.mxu0 0.0
        %806 = vmatpush2.msra.mxu0 0.0
        %807 = vmatprep.subr.mxu0 0.0
        %808 = vmatpush2.msra.mxu0 0.0
        %809 = vmatprep.subr.mxu0 0.0
        %810 = vmatpush2.msra.mxu0 0.0
        %811 = vmatprep.subr.mxu0 0.0
        %812 = vmatpush2.msra.mxu0 0.0
        %813 = vmatprep.subr.mxu0 0.0
        %814 = vmatpush2.msra.mxu0 0.0
        %815 = vmatprep.subr.mxu0 0.0
        %816 = vmatpush2.msra.mxu0 0.0
        %817 = vmatprep.subr.mxu0 0.0
        %818 = vmatpush2.msra.mxu0 0.0
        %819 = vmatprep.subr.mxu0 0.0
        %820 = vmatpush2.msra.mxu0 0.0
        %821 = vmatprep.subr.mxu0 0.0
        %822 = vmatpush2.msra.mxu0 0.0
        %823 = vmatprep.subr.mxu0 0.0
        %824 = vmatpush2.msra.mxu0 0.0
        %825 = vmatprep.mubr.f32.mxu0 0.0
        %826 = vmatmul.mubr.f32.gmra.mxu0 %v759
        %v827 = vpop.f32.mrf.mxu0
        %v828 = vadd.f32 %v756, %v827
        %v829 = vpop.f32.mrf.mxu0
        %830 = vdwg.mxu0
        %v831 = vld [vmem:[%s10] sm:$0xff]
        %v832 = vld [vmem:[%s10 + $0x8] sm:$0xff]
        %v833 = vld [vmem:[%s10 + $0x10] sm:$0xff]
        %v834 = vld [vmem:[%s10 + $0x18] sm:$0xff]
        %v835 = vld [vmem:[%s11] sm:$0x1]
        %v837 = vlaneseq
        %v838 = vshrl.u32 %v837, 7
        %v839 = vsub.s32 0, %v838
        %v840 = vrot.slane %v835, %v839
        %842 = vmatprep.subr.mxu0 0.0
        %843 = vmatpush1.msra.mxu0 0.0
        %844 = vmatprep.subr.mxu0 0.0
        %845 = vmatpush1.msra.mxu0 0.0
        %846 = vmatprep.subr.mxu0 0.0
        %847 = vmatpush1.msra.mxu0 0.0
        %848 = vmatprep.subr.mxu0 0.0
        %849 = vmatpush1.msra.mxu0 0.0
        %850 = vmatprep.subr.mxu0 0.0
        %851 = vmatpush1.msra.mxu0 0.0
        %852 = vmatprep.subr.mxu0 0.0
        %853 = vmatpush1.msra.mxu0 0.0
        %854 = vmatprep.subr.mxu0 0.0
        %855 = vmatpush1.msra.mxu0 0.0
        %856 = vmatprep.subr.mxu0 0.0
        %857 = vmatpush1.msra.mxu0 0.0
        %858 = vmatprep.subr.mxu0 0.0
        %859 = vmatpush1.msra.mxu0 0.0
        %860 = vmatprep.subr.mxu0 0.0
        %861 = vmatpush1.msra.mxu0 0.0
        %862 = vmatprep.subr.mxu0 0.0
        %863 = vmatpush1.msra.mxu0 0.0
        %864 = vmatprep.subr.mxu0 0.0
        %865 = vmatpush1.msra.mxu0 0.0
        %866 = vmatprep.subr.mxu0 0.0
        %867 = vmatpush1.msra.mxu0 %v834
        %868 = vmatprep.subr.mxu0 0.0
        %869 = vmatpush1.msra.mxu0 %v833
        %870 = vmatprep.subr.mxu0 0.0
        %871 = vmatpush1.msra.mxu0 %v832
        %872 = vmatprep.subr.mxu0 0.0
        %873 = vmatpush1.msra.mxu0 %v831
        %874 = vmatprep.subr.mxu0 0.0
        %875 = vmatpush2.msra.mxu0 0.0
        %876 = vmatprep.subr.mxu0 0.0
        %877 = vmatpush2.msra.mxu0 0.0
        %878 = vmatprep.subr.mxu0 0.0
        %879 = vmatpush2.msra.mxu0 0.0
        %880 = vmatprep.subr.mxu0 0.0
        %881 = vmatpush2.msra.mxu0 0.0
        %882 = vmatprep.subr.mxu0 0.0
        %883 = vmatpush2.msra.mxu0 0.0
        %884 = vmatprep.subr.mxu0 0.0
        %885 = vmatpush2.msra.mxu0 0.0
        %886 = vmatprep.subr.mxu0 0.0
        %887 = vmatpush2.msra.mxu0 0.0
        %888 = vmatprep.subr.mxu0 0.0
        %889 = vmatpush2.msra.mxu0 0.0
        %890 = vmatprep.subr.mxu0 0.0
        %891 = vmatpush2.msra.mxu0 0.0
        %892 = vmatprep.subr.mxu0 0.0
        %893 = vmatpush2.msra.mxu0 0.0
        %894 = vmatprep.subr.mxu0 0.0
        %895 = vmatpush2.msra.mxu0 0.0
        %896 = vmatprep.subr.mxu0 0.0
        %897 = vmatpush2.msra.mxu0 0.0
        %898 = vmatprep.subr.mxu0 0.0
        %899 = vmatpush2.msra.mxu0 0.0
        %900 = vmatprep.subr.mxu0 0.0
        %901 = vmatpush2.msra.mxu0 0.0
        %902 = vmatprep.subr.mxu0 0.0
        %903 = vmatpush2.msra.mxu0 0.0
        %904 = vmatprep.subr.mxu0 0.0
        %905 = vmatpush2.msra.mxu0 0.0
        %906 = vmatprep.mubr.f32.mxu0 0.0
        %907 = vmatmul.mubr.f32.gmra.mxu0 %v759
        %v908 = vpop.f32.mrf.mxu0
        %v909 = vadd.f32 %v840, %v908
        %v910 = vpop.f32.mrf.mxu0
        %911 = vdwg.mxu0
        %914 = vrot.lane.b32.xlu0 %v739, 120
        %v915 = vpop.permute.xlu0 %914
        %916 = vrot.lane.b32.xlu0 %v744, 120
        %v917 = vpop.permute.xlu0 %916
        %918 = vrot.lane.b32.xlu0 %v739, 112
        %v919 = vpop.permute.xlu0 %918
        %920 = vrot.lane.b32.xlu0 %v744, 112
        %v921 = vpop.permute.xlu0 %920
        %922 = vrot.lane.b32.xlu0 %v739, 104
        %v923 = vpop.permute.xlu0 %922
        %924 = vrot.lane.b32.xlu0 %v744, 104
        %v925 = vpop.permute.xlu0 %924
        %927 = vrot.lane.b32.xlu0 %v828, 120
        %v928 = vpop.permute.xlu0 %927
        %929 = vrot.lane.b32.xlu0 %v828, 112
        %v930 = vpop.permute.xlu0 %929
        %931 = vrot.lane.b32.xlu0 %v828, 104
        %v932 = vpop.permute.xlu0 %931
        %934 = vrot.lane.b32.xlu0 %v909, 120
        %v935 = vpop.permute.xlu0 %934
        %937 = vrot.lane.b32.xlu0 %v909, 112
        %v938 = vpop.permute.xlu0 %937
        %940 = vrot.lane.b32.xlu0 %v909, 104
        %v941 = vpop.permute.xlu0 %940
        %vm943 = vcmask 64512
        %v944 = vsel %vm943, %v739, 0
        %v946 = vsel %vm943, %v744, 0
        %v948 = vsel %vm943, %v828, 0
        %950 = vmatprep.subr.mxu0 0.0
        %951 = vmatpush1.xpose.msra.mxu0 0.0
        %952 = vmatprep.subr.mxu0 0.0
        %953 = vmatpush1.xpose.msra.mxu0 0.0
        %954 = vmatprep.subr.mxu0 0.0
        %955 = vmatpush1.xpose.msra.mxu0 0.0
        %956 = vmatprep.subr.mxu0 0.0
        %957 = vmatpush1.xpose.msra.mxu0 0.0
        %958 = vmatprep.subr.mxu0 0.0
        %959 = vmatpush1.xpose.msra.mxu0 0.0
        %960 = vmatprep.subr.mxu0 0.0
        %961 = vmatpush1.xpose.msra.mxu0 0.0
        %962 = vmatprep.subr.mxu0 0.0
        %963 = vmatpush1.xpose.msra.mxu0 0.0
        %964 = vmatprep.subr.mxu0 0.0
        %965 = vmatpush1.xpose.msra.mxu0 0.0
        %966 = vmatprep.subr.mxu0 0.0
        %967 = vmatpush1.xpose.msra.mxu0 0.0
        %968 = vmatprep.subr.mxu0 0.0
        %969 = vmatpush1.xpose.msra.mxu0 0.0
        %970 = vmatprep.subr.mxu0 0.0
        %971 = vmatpush1.xpose.msra.mxu0 0.0
        %972 = vmatprep.subr.mxu0 0.0
        %973 = vmatpush1.xpose.msra.mxu0 0.0
        %974 = vmatprep.subr.mxu0 0.0
        %975 = vmatpush1.xpose.msra.mxu0 0.0
        %976 = vmatprep.subr.mxu0 0.0
        %977 = vmatpush1.xpose.msra.mxu0 0.0
        %978 = vmatprep.subr.mxu0 0.0
        %979 = vmatpush1.xpose.msra.mxu0 0.0
        %980 = vmatprep.subr.mxu0 0.0
        %981 = vmatpush1.xpose.msra.mxu0 %v948
        %982 = vmatprep.subr.mxu0 0.0
        %983 = vmatpush2.xpose.msra.mxu0 0.0
        %984 = vmatprep.subr.mxu0 0.0
        %985 = vmatpush2.xpose.msra.mxu0 0.0
        %986 = vmatprep.subr.mxu0 0.0
        %987 = vmatpush2.xpose.msra.mxu0 0.0
        %988 = vmatprep.subr.mxu0 0.0
        %989 = vmatpush2.xpose.msra.mxu0 0.0
        %990 = vmatprep.subr.mxu0 0.0
        %991 = vmatpush2.xpose.msra.mxu0 0.0
        %992 = vmatprep.subr.mxu0 0.0
        %993 = vmatpush2.xpose.msra.mxu0 0.0
        %994 = vmatprep.subr.mxu0 0.0
        %995 = vmatpush2.xpose.msra.mxu0 0.0
        %996 = vmatprep.subr.mxu0 0.0
        %997 = vmatpush2.xpose.msra.mxu0 0.0
        %998 = vmatprep.subr.mxu0 0.0
        %999 = vmatpush2.xpose.msra.mxu0 0.0
        %1000 = vmatprep.subr.mxu0 0.0
        %1001 = vmatpush2.xpose.msra.mxu0 0.0
        %1002 = vmatprep.subr.mxu0 0.0
        %1003 = vmatpush2.xpose.msra.mxu0 0.0
        %1004 = vmatprep.subr.mxu0 0.0
        %1005 = vmatpush2.xpose.msra.mxu0 0.0
        %1006 = vmatprep.subr.mxu0 0.0
        %1007 = vmatpush2.xpose.msra.mxu0 0.0
        %1008 = vmatprep.subr.mxu0 0.0
        %1009 = vmatpush2.xpose.msra.mxu0 0.0
        %1010 = vmatprep.subr.mxu0 0.0
        %1011 = vmatpush2.xpose.msra.mxu0 0.0
        %1012 = vmatprep.subr.mxu0 0.0
        %1013 = vmatpush2.xpose.msra.mxu0 0.0
        %1014 = vmatprep.mubr.f32.mxu0 0.0
        %1015 = vmatmul.mubr.f32.gmra.mxu0 %v944
        %v1016 = vpop.f32.mrf.mxu0
        %v1017 = vadd.f32 0.0, %v1016
        %v1018 = vpop.f32.mrf.mxu0
        %1019 = vmatprep.mubr.f32.mxu0 0.0
        %1020 = vmatmul.mubr.f32.gmra.mxu0 %v946
        %v1021 = vpop.f32.mrf.mxu0
        %v1022 = vadd.f32 0.0, %v1021
        %v1023 = vpop.f32.mrf.mxu0
        %1024 = vdwg.mxu0
        %v1025 = vsel %vm943, %v915, 0
        %v1027 = vsel %vm943, %v917, 0
        %v1029 = vsel %vm943, %v928, 0
        %1031 = vmatprep.subr.mxu0 0.0
        %1032 = vmatpush1.xpose.msra.mxu0 0.0
        %1033 = vmatprep.subr.mxu0 0.0
        %1034 = vmatpush1.xpose.msra.mxu0 0.0
        %1035 = vmatprep.subr.mxu0 0.0
        %1036 = vmatpush1.xpose.msra.mxu0 0.0
        %1037 = vmatprep.subr.mxu0 0.0
        %1038 = vmatpush1.xpose.msra.mxu0 0.0
        %1039 = vmatprep.subr.mxu0 0.0
        %1040 = vmatpush1.xpose.msra.mxu0 0.0
        %1041 = vmatprep.subr.mxu0 0.0
        %1042 = vmatpush1.xpose.msra.mxu0 0.0
        %1043 = vmatprep.subr.mxu0 0.0
        %1044 = vmatpush1.xpose.msra.mxu0 0.0
        %1045 = vmatprep.subr.mxu0 0.0
        %1046 = vmatpush1.xpose.msra.mxu0 0.0
        %1047 = vmatprep.subr.mxu0 0.0
        %1048 = vmatpush1.xpose.msra.mxu0 0.0
        %1049 = vmatprep.subr.mxu0 0.0
        %1050 = vmatpush1.xpose.msra.mxu0 0.0
        %1051 = vmatprep.subr.mxu0 0.0
        %1052 = vmatpush1.xpose.msra.mxu0 0.0
        %1053 = vmatprep.subr.mxu0 0.0
        %1054 = vmatpush1.xpose.msra.mxu0 0.0
        %1055 = vmatprep.subr.mxu0 0.0
        %1056 = vmatpush1.xpose.msra.mxu0 0.0
        %1057 = vmatprep.subr.mxu0 0.0
        %1058 = vmatpush1.xpose.msra.mxu0 0.0
        %1059 = vmatprep.subr.mxu0 0.0
        %1060 = vmatpush1.xpose.msra.mxu0 0.0
        %1061 = vmatprep.subr.mxu0 0.0
        %1062 = vmatpush1.xpose.msra.mxu0 %v1029
        %1063 = vmatprep.subr.mxu0 0.0
        %1064 = vmatpush2.xpose.msra.mxu0 0.0
        %1065 = vmatprep.subr.mxu0 0.0
        %1066 = vmatpush2.xpose.msra.mxu0 0.0
        %1067 = vmatprep.subr.mxu0 0.0
        %1068 = vmatpush2.xpose.msra.mxu0 0.0
        %1069 = vmatprep.subr.mxu0 0.0
        %1070 = vmatpush2.xpose.msra.mxu0 0.0
        %1071 = vmatprep.subr.mxu0 0.0
        %1072 = vmatpush2.xpose.msra.mxu0 0.0
        %1073 = vmatprep.subr.mxu0 0.0
        %1074 = vmatpush2.xpose.msra.mxu0 0.0
        %1075 = vmatprep.subr.mxu0 0.0
        %1076 = vmatpush2.xpose.msra.mxu0 0.0
        %1077 = vmatprep.subr.mxu0 0.0
        %1078 = vmatpush2.xpose.msra.mxu0 0.0
        %1079 = vmatprep.subr.mxu0 0.0
        %1080 = vmatpush2.xpose.msra.mxu0 0.0
        %1081 = vmatprep.subr.mxu0 0.0
        %1082 = vmatpush2.xpose.msra.mxu0 0.0
        %1083 = vmatprep.subr.mxu0 0.0
        %1084 = vmatpush2.xpose.msra.mxu0 0.0
        %1085 = vmatprep.subr.mxu0 0.0
        %1086 = vmatpush2.xpose.msra.mxu0 0.0
        %1087 = vmatprep.subr.mxu0 0.0
        %1088 = vmatpush2.xpose.msra.mxu0 0.0
        %1089 = vmatprep.subr.mxu0 0.0
        %1090 = vmatpush2.xpose.msra.mxu0 0.0
        %1091 = vmatprep.subr.mxu0 0.0
        %1092 = vmatpush2.xpose.msra.mxu0 0.0
        %1093 = vmatprep.subr.mxu0 0.0
        %1094 = vmatpush2.xpose.msra.mxu0 0.0
        %1095 = vmatprep.mubr.f32.mxu0 0.0
        %1096 = vmatmul.mubr.f32.gmra.mxu0 %v1025
        %v1097 = vpop.f32.mrf.mxu0
        %v1098 = vadd.f32 0.0, %v1097
        %v1099 = vpop.f32.mrf.mxu0
        %1100 = vmatprep.mubr.f32.mxu0 0.0
        %1101 = vmatmul.mubr.f32.gmra.mxu0 %v1027
        %v1102 = vpop.f32.mrf.mxu0
        %v1103 = vadd.f32 0.0, %v1102
        %v1104 = vpop.f32.mrf.mxu0
        %1105 = vdwg.mxu0
        %v1106 = vsel %vm943, %v919, 0
        %v1108 = vsel %vm943, %v921, 0
        %v1110 = vsel %vm943, %v930, 0
        %1112 = vmatprep.subr.mxu0 0.0
        %1113 = vmatpush1.xpose.msra.mxu0 0.0
        %1114 = vmatprep.subr.mxu0 0.0
        %1115 = vmatpush1.xpose.msra.mxu0 0.0
        %1116 = vmatprep.subr.mxu0 0.0
        %1117 = vmatpush1.xpose.msra.mxu0 0.0
        %1118 = vmatprep.subr.mxu0 0.0
        %1119 = vmatpush1.xpose.msra.mxu0 0.0
        %1120 = vmatprep.subr.mxu0 0.0
        %1121 = vmatpush1.xpose.msra.mxu0 0.0
        %1122 = vmatprep.subr.mxu0 0.0
        %1123 = vmatpush1.xpose.msra.mxu0 0.0
        %1124 = vmatprep.subr.mxu0 0.0
        %1125 = vmatpush1.xpose.msra.mxu0 0.0
        %1126 = vmatprep.subr.mxu0 0.0
        %1127 = vmatpush1.xpose.msra.mxu0 0.0
        %1128 = vmatprep.subr.mxu0 0.0
        %1129 = vmatpush1.xpose.msra.mxu0 0.0
        %1130 = vmatprep.subr.mxu0 0.0
        %1131 = vmatpush1.xpose.msra.mxu0 0.0
        %1132 = vmatprep.subr.mxu0 0.0
        %1133 = vmatpush1.xpose.msra.mxu0 0.0
        %1134 = vmatprep.subr.mxu0 0.0
        %1135 = vmatpush1.xpose.msra.mxu0 0.0
        %1136 = vmatprep.subr.mxu0 0.0
        %1137 = vmatpush1.xpose.msra.mxu0 0.0
        %1138 = vmatprep.subr.mxu0 0.0
        %1139 = vmatpush1.xpose.msra.mxu0 0.0
        %1140 = vmatprep.subr.mxu0 0.0
        %1141 = vmatpush1.xpose.msra.mxu0 0.0
        %1142 = vmatprep.subr.mxu0 0.0
        %1143 = vmatpush1.xpose.msra.mxu0 %v1110
        %1144 = vmatprep.subr.mxu0 0.0
        %1145 = vmatpush2.xpose.msra.mxu0 0.0
        %1146 = vmatprep.subr.mxu0 0.0
        %1147 = vmatpush2.xpose.msra.mxu0 0.0
        %1148 = vmatprep.subr.mxu0 0.0
        %1149 = vmatpush2.xpose.msra.mxu0 0.0
        %1150 = vmatprep.subr.mxu0 0.0
        %1151 = vmatpush2.xpose.msra.mxu0 0.0
        %1152 = vmatprep.subr.mxu0 0.0
        %1153 = vmatpush2.xpose.msra.mxu0 0.0
        %1154 = vmatprep.subr.mxu0 0.0
        %1155 = vmatpush2.xpose.msra.mxu0 0.0
        %1156 = vmatprep.subr.mxu0 0.0
        %1157 = vmatpush2.xpose.msra.mxu0 0.0
        %1158 = vmatprep.subr.mxu0 0.0
        %1159 = vmatpush2.xpose.msra.mxu0 0.0
        %1160 = vmatprep.subr.mxu0 0.0
        %1161 = vmatpush2.xpose.msra.mxu0 0.0
        %1162 = vmatprep.subr.mxu0 0.0
        %1163 = vmatpush2.xpose.msra.mxu0 0.0
        %1164 = vmatprep.subr.mxu0 0.0
        %1165 = vmatpush2.xpose.msra.mxu0 0.0
        %1166 = vmatprep.subr.mxu0 0.0
        %1167 = vmatpush2.xpose.msra.mxu0 0.0
        %1168 = vmatprep.subr.mxu0 0.0
        %1169 = vmatpush2.xpose.msra.mxu0 0.0
        %1170 = vmatprep.subr.mxu0 0.0
        %1171 = vmatpush2.xpose.msra.mxu0 0.0
        %1172 = vmatprep.subr.mxu0 0.0
        %1173 = vmatpush2.xpose.msra.mxu0 0.0
        %1174 = vmatprep.subr.mxu0 0.0
        %1175 = vmatpush2.xpose.msra.mxu0 0.0
        %1176 = vmatprep.mubr.f32.mxu0 0.0
        %1177 = vmatmul.mubr.f32.gmra.mxu0 %v1106
        %v1178 = vpop.f32.mrf.mxu0
        %v1179 = vadd.f32 0.0, %v1178
        %v1180 = vpop.f32.mrf.mxu0
        %1181 = vmatprep.mubr.f32.mxu0 0.0
        %1182 = vmatmul.mubr.f32.gmra.mxu0 %v1108
        %v1183 = vpop.f32.mrf.mxu0
        %v1184 = vadd.f32 0.0, %v1183
        %v1185 = vpop.f32.mrf.mxu0
        %1186 = vdwg.mxu0
        %v1187 = vsel %vm943, %v923, 0
        %v1189 = vsel %vm943, %v925, 0
        %v1191 = vsel %vm943, %v932, 0
        %1193 = vmatprep.subr.mxu0 0.0
        %1194 = vmatpush1.xpose.msra.mxu0 0.0
        %1195 = vmatprep.subr.mxu0 0.0
        %1196 = vmatpush1.xpose.msra.mxu0 0.0
        %1197 = vmatprep.subr.mxu0 0.0
        %1198 = vmatpush1.xpose.msra.mxu0 0.0
        %1199 = vmatprep.subr.mxu0 0.0
        %1200 = vmatpush1.xpose.msra.mxu0 0.0
        %1201 = vmatprep.subr.mxu0 0.0
        %1202 = vmatpush1.xpose.msra.mxu0 0.0
        %1203 = vmatprep.subr.mxu0 0.0
        %1204 = vmatpush1.xpose.msra.mxu0 0.0
        %1205 = vmatprep.subr.mxu0 0.0
        %1206 = vmatpush1.xpose.msra.mxu0 0.0
        %1207 = vmatprep.subr.mxu0 0.0
        %1208 = vmatpush1.xpose.msra.mxu0 0.0
        %1209 = vmatprep.subr.mxu0 0.0
        %1210 = vmatpush1.xpose.msra.mxu0 0.0
        %1211 = vmatprep.subr.mxu0 0.0
        %1212 = vmatpush1.xpose.msra.mxu0 0.0
        %1213 = vmatprep.subr.mxu0 0.0
        %1214 = vmatpush1.xpose.msra.mxu0 0.0
        %1215 = vmatprep.subr.mxu0 0.0
        %1216 = vmatpush1.xpose.msra.mxu0 0.0
        %1217 = vmatprep.subr.mxu0 0.0
        %1218 = vmatpush1.xpose.msra.mxu0 0.0
        %1219 = vmatprep.subr.mxu0 0.0
        %1220 = vmatpush1.xpose.msra.mxu0 0.0
        %1221 = vmatprep.subr.mxu0 0.0
        %1222 = vmatpush1.xpose.msra.mxu0 0.0
        %1223 = vmatprep.subr.mxu0 0.0
        %1224 = vmatpush1.xpose.msra.mxu0 %v1191
        %1225 = vmatprep.subr.mxu0 0.0
        %1226 = vmatpush2.xpose.msra.mxu0 0.0
        %1227 = vmatprep.subr.mxu0 0.0
        %1228 = vmatpush2.xpose.msra.mxu0 0.0
        %1229 = vmatprep.subr.mxu0 0.0
        %1230 = vmatpush2.xpose.msra.mxu0 0.0
        %1231 = vmatprep.subr.mxu0 0.0
        %1232 = vmatpush2.xpose.msra.mxu0 0.0
        %1233 = vmatprep.subr.mxu0 0.0
        %1234 = vmatpush2.xpose.msra.mxu0 0.0
        %1235 = vmatprep.subr.mxu0 0.0
        %1236 = vmatpush2.xpose.msra.mxu0 0.0
        %1237 = vmatprep.subr.mxu0 0.0
        %1238 = vmatpush2.xpose.msra.mxu0 0.0
        %1239 = vmatprep.subr.mxu0 0.0
        %1240 = vmatpush2.xpose.msra.mxu0 0.0
        %1241 = vmatprep.subr.mxu0 0.0
        %1242 = vmatpush2.xpose.msra.mxu0 0.0
        %1243 = vmatprep.subr.mxu0 0.0
        %1244 = vmatpush2.xpose.msra.mxu0 0.0
        %1245 = vmatprep.subr.mxu0 0.0
        %1246 = vmatpush2.xpose.msra.mxu0 0.0
        %1247 = vmatprep.subr.mxu0 0.0
        %1248 = vmatpush2.xpose.msra.mxu0 0.0
        %1249 = vmatprep.subr.mxu0 0.0
        %1250 = vmatpush2.xpose.msra.mxu0 0.0
        %1251 = vmatprep.subr.mxu0 0.0
        %1252 = vmatpush2.xpose.msra.mxu0 0.0
        %1253 = vmatprep.subr.mxu0 0.0
        %1254 = vmatpush2.xpose.msra.mxu0 0.0
        %1255 = vmatprep.subr.mxu0 0.0
        %1256 = vmatpush2.xpose.msra.mxu0 0.0
        %1257 = vmatprep.mubr.f32.mxu0 0.0
        %1258 = vmatmul.mubr.f32.gmra.mxu0 %v1187
        %v1259 = vpop.f32.mrf.mxu0
        %v1260 = vadd.f32 0.0, %v1259
        %v1261 = vpop.f32.mrf.mxu0
        %1262 = vmatprep.mubr.f32.mxu0 0.0
        %1263 = vmatmul.mubr.f32.gmra.mxu0 %v1189
        %v1264 = vpop.f32.mrf.mxu0
        %v1265 = vadd.f32 0.0, %v1264
        %v1266 = vpop.f32.mrf.mxu0
        %1267 = vdwg.mxu0
        %v1268 = vmul.f32 %v1017, 0.35355338
        %v1269 = vmul.f32 %v1022, 0.35355338
        %v1270 = vmul.f32 %v1098, 0.35355338
        %v1271 = vmul.f32 %v1103, 0.35355338
        %v1272 = vmul.f32 %v1179, 0.35355338
        %v1273 = vmul.f32 %v1184, 0.35355338
        %v1274 = vmul.f32 %v1260, 0.35355338
        %v1275 = vmul.f32 %v1265, 0.35355338
        %v1276 = vsel %vm943, %v1268, -inf
        %1277 = vmax.xlane.f32.xlu0 %v1276
        %v1278 = vpop.xlane.xlu0 %1277
        %v1279 = vsel %vm943, %v1269, -inf
        %1280 = vmax.xlane.f32.xlu0 %v1279
        %v1281 = vpop.xlane.xlu0 %1280
        %v1282 = vsel %vm943, %v1270, -inf
        %1283 = vmax.xlane.f32.xlu0 %v1282
        %v1284 = vpop.xlane.xlu0 %1283
        %v1285 = vsel %vm943, %v1271, -inf
        %1286 = vmax.xlane.f32.xlu0 %v1285
        %v1287 = vpop.xlane.xlu0 %1286
        %v1288 = vsel %vm943, %v1272, -inf
        %1289 = vmax.xlane.f32.xlu0 %v1288
        %v1290 = vpop.xlane.xlu0 %1289
        %v1291 = vsel %vm943, %v1273, -inf
        %1292 = vmax.xlane.f32.xlu0 %v1291
        %v1293 = vpop.xlane.xlu0 %1292
        %v1294 = vsel %vm943, %v1274, -inf
        %1295 = vmax.xlane.f32.xlu0 %v1294
        %v1296 = vpop.xlane.xlu0 %1295
        %v1297 = vsel %vm943, %v1275, -inf
        %1298 = vmax.xlane.f32.xlu0 %v1297
        %v1299 = vpop.xlane.xlu0 %1298
        %v1300 = vsub.f32 %v1268, %v1278
        %v1301 = vsub.f32 %v1269, %v1281
        %v1302 = vsub.f32 %v1270, %v1284
        %v1303 = vsub.f32 %v1271, %v1287
        %v1304 = vsub.f32 %v1272, %v1290
        %v1305 = vsub.f32 %v1273, %v1293
        %v1306 = vsub.f32 %v1274, %v1296
        %v1307 = vsub.f32 %v1275, %v1299
        %v1308 = vmul.f32 %v1300, 1.442695
        %v1309 = vpow.pop %v1308
        %v1310 = vmul.f32 %v1301, 1.442695
        %v1311 = vpow.pop %v1310
        %v1312 = vmul.f32 %v1302, 1.442695
        %v1313 = vpow.pop %v1312
        %v1314 = vmul.f32 %v1303, 1.442695
        %v1315 = vpow.pop %v1314
        %v1316 = vmul.f32 %v1304, 1.442695
        %v1317 = vpow.pop %v1316
        %v1318 = vmul.f32 %v1305, 1.442695
        %v1319 = vpow.pop %v1318
        %v1320 = vmul.f32 %v1306, 1.442695
        %v1321 = vpow.pop %v1320
        %v1322 = vmul.f32 %v1307, 1.442695
        %v1323 = vpow.pop %v1322
        %v1324 = vsel %vm943, %v1309, 0.0
        %1325 = vadd.xlane.f32.xlu0 %v1324
        %v1326 = vpop.xlane.xlu0 %1325
        %v1327 = vsel %vm943, %v1311, 0.0
        %1328 = vadd.xlane.f32.xlu0 %v1327
        %v1329 = vpop.xlane.xlu0 %1328
        %v1330 = vsel %vm943, %v1313, 0.0
        %1331 = vadd.xlane.f32.xlu0 %v1330
        %v1332 = vpop.xlane.xlu0 %1331
        %v1333 = vsel %vm943, %v1315, 0.0
        %1334 = vadd.xlane.f32.xlu0 %v1333
        %v1335 = vpop.xlane.xlu0 %1334
        %v1336 = vsel %vm943, %v1317, 0.0
        %1337 = vadd.xlane.f32.xlu0 %v1336
        %v1338 = vpop.xlane.xlu0 %1337
        %v1339 = vsel %vm943, %v1319, 0.0
        %1340 = vadd.xlane.f32.xlu0 %v1339
        %v1341 = vpop.xlane.xlu0 %1340
        %v1342 = vsel %vm943, %v1321, 0.0
        %1343 = vadd.xlane.f32.xlu0 %v1342
        %v1344 = vpop.xlane.xlu0 %1343
        %v1345 = vsel %vm943, %v1323, 0.0
        %1346 = vadd.xlane.f32.xlu0 %v1345
        %v1347 = vpop.xlane.xlu0 %1346
        %v1348 = vrcp.pop %v1326
        %v1349 = vrcp.pop %v1329
        %v1350 = vrcp.pop %v1332
        %v1351 = vrcp.pop %v1335
        %v1352 = vrcp.pop %v1338
        %v1353 = vrcp.pop %v1341
        %v1354 = vrcp.pop %v1344
        %v1355 = vrcp.pop %v1347
        %v1356 = vmul.f32 %v1309, %v1348
        %v1357 = vmul.f32 %v1311, %v1349
        %v1358 = vmul.f32 %v1313, %v1350
        %v1359 = vmul.f32 %v1315, %v1351
        %v1360 = vmul.f32 %v1317, %v1352
        %v1361 = vmul.f32 %v1319, %v1353
        %v1362 = vmul.f32 %v1321, %v1354
        %v1363 = vmul.f32 %v1323, %v1355
        %v1365 = vsel %vm943, %v1356, 0
        %v1368 = vsel %vm943, %v1357, 0
        %1370 = vmatprep.subr.mxu0 0.0
        %1371 = vmatpush1.msra.mxu0 0.0
        %1372 = vmatprep.subr.mxu0 0.0
        %1373 = vmatpush1.msra.mxu0 0.0
        %1374 = vmatprep.subr.mxu0 0.0
        %1375 = vmatpush1.msra.mxu0 0.0
        %1376 = vmatprep.subr.mxu0 0.0
        %1377 = vmatpush1.msra.mxu0 0.0
        %1378 = vmatprep.subr.mxu0 0.0
        %1379 = vmatpush1.msra.mxu0 0.0
        %1380 = vmatprep.subr.mxu0 0.0
        %1381 = vmatpush1.msra.mxu0 0.0
        %1382 = vmatprep.subr.mxu0 0.0
        %1383 = vmatpush1.msra.mxu0 0.0
        %1384 = vmatprep.subr.mxu0 0.0
        %1385 = vmatpush1.msra.mxu0 0.0
        %1386 = vmatprep.subr.mxu0 0.0
        %1387 = vmatpush1.msra.mxu0 0.0
        %1388 = vmatprep.subr.mxu0 0.0
        %1389 = vmatpush1.msra.mxu0 0.0
        %1390 = vmatprep.subr.mxu0 0.0
        %1391 = vmatpush1.msra.mxu0 0.0
        %1392 = vmatprep.subr.mxu0 0.0
        %1393 = vmatpush1.msra.mxu0 0.0
        %1394 = vmatprep.subr.mxu0 0.0
        %1395 = vmatpush1.msra.mxu0 0.0
        %1396 = vmatprep.subr.mxu0 0.0
        %1397 = vmatpush1.msra.mxu0 0.0
        %1398 = vmatprep.subr.mxu0 0.0
        %1399 = vmatpush1.msra.mxu0 0.0
        %1400 = vmatprep.subr.mxu0 0.0
        %1401 = vmatpush1.msra.mxu0 %v909
        %1402 = vmatprep.subr.mxu0 0.0
        %1403 = vmatpush2.msra.mxu0 0.0
        %1404 = vmatprep.subr.mxu0 0.0
        %1405 = vmatpush2.msra.mxu0 0.0
        %1406 = vmatprep.subr.mxu0 0.0
        %1407 = vmatpush2.msra.mxu0 0.0
        %1408 = vmatprep.subr.mxu0 0.0
        %1409 = vmatpush2.msra.mxu0 0.0
        %1410 = vmatprep.subr.mxu0 0.0
        %1411 = vmatpush2.msra.mxu0 0.0
        %1412 = vmatprep.subr.mxu0 0.0
        %1413 = vmatpush2.msra.mxu0 0.0
        %1414 = vmatprep.subr.mxu0 0.0
        %1415 = vmatpush2.msra.mxu0 0.0
        %1416 = vmatprep.subr.mxu0 0.0
        %1417 = vmatpush2.msra.mxu0 0.0
        %1418 = vmatprep.subr.mxu0 0.0
        %1419 = vmatpush2.msra.mxu0 0.0
        %1420 = vmatprep.subr.mxu0 0.0
        %1421 = vmatpush2.msra.mxu0 0.0
        %1422 = vmatprep.subr.mxu0 0.0
        %1423 = vmatpush2.msra.mxu0 0.0
        %1424 = vmatprep.subr.mxu0 0.0
        %1425 = vmatpush2.msra.mxu0 0.0
        %1426 = vmatprep.subr.mxu0 0.0
        %1427 = vmatpush2.msra.mxu0 0.0
        %1428 = vmatprep.subr.mxu0 0.0
        %1429 = vmatpush2.msra.mxu0 0.0
        %1430 = vmatprep.subr.mxu0 0.0
        %1431 = vmatpush2.msra.mxu0 0.0
        %1432 = vmatprep.subr.mxu0 0.0
        %1433 = vmatpush2.msra.mxu0 0.0
        %1434 = vmatprep.mubr.f32.mxu0 0.0
        %1435 = vmatmul.mubr.f32.gmra.mxu0 %v1365
        %v1436 = vpop.f32.mrf.mxu0
        %v1437 = vadd.f32 0.0, %v1436
        %v1438 = vpop.f32.mrf.mxu0
        %1439 = vmatprep.mubr.f32.mxu0 0.0
        %1440 = vmatmul.mubr.f32.gmra.mxu0 %v1368
        %v1441 = vpop.f32.mrf.mxu0
        %v1442 = vadd.f32 0.0, %v1441
        %v1443 = vpop.f32.mrf.mxu0
        %1444 = vdwg.mxu0
        %v1446 = vsel %vm943, %v1358, 0
        %v1449 = vsel %vm943, %v1359, 0
        %1451 = vmatprep.subr.mxu0 0.0
        %1452 = vmatpush1.msra.mxu0 0.0
        %1453 = vmatprep.subr.mxu0 0.0
        %1454 = vmatpush1.msra.mxu0 0.0
        %1455 = vmatprep.subr.mxu0 0.0
        %1456 = vmatpush1.msra.mxu0 0.0
        %1457 = vmatprep.subr.mxu0 0.0
        %1458 = vmatpush1.msra.mxu0 0.0
        %1459 = vmatprep.subr.mxu0 0.0
        %1460 = vmatpush1.msra.mxu0 0.0
        %1461 = vmatprep.subr.mxu0 0.0
        %1462 = vmatpush1.msra.mxu0 0.0
        %1463 = vmatprep.subr.mxu0 0.0
        %1464 = vmatpush1.msra.mxu0 0.0
        %1465 = vmatprep.subr.mxu0 0.0
        %1466 = vmatpush1.msra.mxu0 0.0
        %1467 = vmatprep.subr.mxu0 0.0
        %1468 = vmatpush1.msra.mxu0 0.0
        %1469 = vmatprep.subr.mxu0 0.0
        %1470 = vmatpush1.msra.mxu0 0.0
        %1471 = vmatprep.subr.mxu0 0.0
        %1472 = vmatpush1.msra.mxu0 0.0
        %1473 = vmatprep.subr.mxu0 0.0
        %1474 = vmatpush1.msra.mxu0 0.0
        %1475 = vmatprep.subr.mxu0 0.0
        %1476 = vmatpush1.msra.mxu0 0.0
        %1477 = vmatprep.subr.mxu0 0.0
        %1478 = vmatpush1.msra.mxu0 0.0
        %1479 = vmatprep.subr.mxu0 0.0
        %1480 = vmatpush1.msra.mxu0 0.0
        %1481 = vmatprep.subr.mxu0 0.0
        %1482 = vmatpush1.msra.mxu0 %v935
        %1483 = vmatprep.subr.mxu0 0.0
        %1484 = vmatpush2.msra.mxu0 0.0
        %1485 = vmatprep.subr.mxu0 0.0
        %1486 = vmatpush2.msra.mxu0 0.0
        %1487 = vmatprep.subr.mxu0 0.0
        %1488 = vmatpush2.msra.mxu0 0.0
        %1489 = vmatprep.subr.mxu0 0.0
        %1490 = vmatpush2.msra.mxu0 0.0
        %1491 = vmatprep.subr.mxu0 0.0
        %1492 = vmatpush2.msra.mxu0 0.0
        %1493 = vmatprep.subr.mxu0 0.0
        %1494 = vmatpush2.msra.mxu0 0.0
        %1495 = vmatprep.subr.mxu0 0.0
        %1496 = vmatpush2.msra.mxu0 0.0
        %1497 = vmatprep.subr.mxu0 0.0
        %1498 = vmatpush2.msra.mxu0 0.0
        %1499 = vmatprep.subr.mxu0 0.0
        %1500 = vmatpush2.msra.mxu0 0.0
        %1501 = vmatprep.subr.mxu0 0.0
        %1502 = vmatpush2.msra.mxu0 0.0
        %1503 = vmatprep.subr.mxu0 0.0
        %1504 = vmatpush2.msra.mxu0 0.0
        %1505 = vmatprep.subr.mxu0 0.0
        %1506 = vmatpush2.msra.mxu0 0.0
        %1507 = vmatprep.subr.mxu0 0.0
        %1508 = vmatpush2.msra.mxu0 0.0
        %1509 = vmatprep.subr.mxu0 0.0
        %1510 = vmatpush2.msra.mxu0 0.0
        %1511 = vmatprep.subr.mxu0 0.0
        %1512 = vmatpush2.msra.mxu0 0.0
        %1513 = vmatprep.subr.mxu0 0.0
        %1514 = vmatpush2.msra.mxu0 0.0
        %1515 = vmatprep.mubr.f32.mxu0 0.0
        %1516 = vmatmul.mubr.f32.gmra.mxu0 %v1446
        %v1517 = vpop.f32.mrf.mxu0
        %v1518 = vadd.f32 0.0, %v1517
        %v1519 = vpop.f32.mrf.mxu0
        %1520 = vmatprep.mubr.f32.mxu0 0.0
        %1521 = vmatmul.mubr.f32.gmra.mxu0 %v1449
        %v1522 = vpop.f32.mrf.mxu0
        %v1523 = vadd.f32 0.0, %v1522
        %v1524 = vpop.f32.mrf.mxu0
        %1525 = vdwg.mxu0
        %v1527 = vsel %vm943, %v1360, 0
        %v1530 = vsel %vm943, %v1361, 0
        %1532 = vmatprep.subr.mxu0 0.0
        %1533 = vmatpush1.msra.mxu0 0.0
        %1534 = vmatprep.subr.mxu0 0.0
        %1535 = vmatpush1.msra.mxu0 0.0
        %1536 = vmatprep.subr.mxu0 0.0
        %1537 = vmatpush1.msra.mxu0 0.0
        %1538 = vmatprep.subr.mxu0 0.0
        %1539 = vmatpush1.msra.mxu0 0.0
        %1540 = vmatprep.subr.mxu0 0.0
        %1541 = vmatpush1.msra.mxu0 0.0
        %1542 = vmatprep.subr.mxu0 0.0
        %1543 = vmatpush1.msra.mxu0 0.0
        %1544 = vmatprep.subr.mxu0 0.0
        %1545 = vmatpush1.msra.mxu0 0.0
        %1546 = vmatprep.subr.mxu0 0.0
        %1547 = vmatpush1.msra.mxu0 0.0
        %1548 = vmatprep.subr.mxu0 0.0
        %1549 = vmatpush1.msra.mxu0 0.0
        %1550 = vmatprep.subr.mxu0 0.0
        %1551 = vmatpush1.msra.mxu0 0.0
        %1552 = vmatprep.subr.mxu0 0.0
        %1553 = vmatpush1.msra.mxu0 0.0
        %1554 = vmatprep.subr.mxu0 0.0
        %1555 = vmatpush1.msra.mxu0 0.0
        %1556 = vmatprep.subr.mxu0 0.0
        %1557 = vmatpush1.msra.mxu0 0.0
        %1558 = vmatprep.subr.mxu0 0.0
        %1559 = vmatpush1.msra.mxu0 0.0
        %1560 = vmatprep.subr.mxu0 0.0
        %1561 = vmatpush1.msra.mxu0 0.0
        %1562 = vmatprep.subr.mxu0 0.0
        %1563 = vmatpush1.msra.mxu0 %v938
        %1564 = vmatprep.subr.mxu0 0.0
        %1565 = vmatpush2.msra.mxu0 0.0
        %1566 = vmatprep.subr.mxu0 0.0
        %1567 = vmatpush2.msra.mxu0 0.0
        %1568 = vmatprep.subr.mxu0 0.0
        %1569 = vmatpush2.msra.mxu0 0.0
        %1570 = vmatprep.subr.mxu0 0.0
        %1571 = vmatpush2.msra.mxu0 0.0
        %1572 = vmatprep.subr.mxu0 0.0
        %1573 = vmatpush2.msra.mxu0 0.0
        %1574 = vmatprep.subr.mxu0 0.0
        %1575 = vmatpush2.msra.mxu0 0.0
        %1576 = vmatprep.subr.mxu0 0.0
        %1577 = vmatpush2.msra.mxu0 0.0
        %1578 = vmatprep.subr.mxu0 0.0
        %1579 = vmatpush2.msra.mxu0 0.0
        %1580 = vmatprep.subr.mxu0 0.0
        %1581 = vmatpush2.msra.mxu0 0.0
        %1582 = vmatprep.subr.mxu0 0.0
        %1583 = vmatpush2.msra.mxu0 0.0
        %1584 = vmatprep.subr.mxu0 0.0
        %1585 = vmatpush2.msra.mxu0 0.0
        %1586 = vmatprep.subr.mxu0 0.0
        %1587 = vmatpush2.msra.mxu0 0.0
        %1588 = vmatprep.subr.mxu0 0.0
        %1589 = vmatpush2.msra.mxu0 0.0
        %1590 = vmatprep.subr.mxu0 0.0
        %1591 = vmatpush2.msra.mxu0 0.0
        %1592 = vmatprep.subr.mxu0 0.0
        %1593 = vmatpush2.msra.mxu0 0.0
        %1594 = vmatprep.subr.mxu0 0.0
        %1595 = vmatpush2.msra.mxu0 0.0
        %1596 = vmatprep.mubr.f32.mxu0 0.0
        %1597 = vmatmul.mubr.f32.gmra.mxu0 %v1527
        %v1598 = vpop.f32.mrf.mxu0
        %v1599 = vadd.f32 0.0, %v1598
        %v1600 = vpop.f32.mrf.mxu0
        %1601 = vmatprep.mubr.f32.mxu0 0.0
        %1602 = vmatmul.mubr.f32.gmra.mxu0 %v1530
        %v1603 = vpop.f32.mrf.mxu0
        %v1604 = vadd.f32 0.0, %v1603
        %v1605 = vpop.f32.mrf.mxu0
        %1606 = vdwg.mxu0
        %v1608 = vsel %vm943, %v1362, 0
        %v1611 = vsel %vm943, %v1363, 0
        %1613 = vmatprep.subr.mxu0 0.0
        %1614 = vmatpush1.msra.mxu0 0.0
        %1615 = vmatprep.subr.mxu0 0.0
        %1616 = vmatpush1.msra.mxu0 0.0
        %1617 = vmatprep.subr.mxu0 0.0
        %1618 = vmatpush1.msra.mxu0 0.0
        %1619 = vmatprep.subr.mxu0 0.0
        %1620 = vmatpush1.msra.mxu0 0.0
        %1621 = vmatprep.subr.mxu0 0.0
        %1622 = vmatpush1.msra.mxu0 0.0
        %1623 = vmatprep.subr.mxu0 0.0
        %1624 = vmatpush1.msra.mxu0 0.0
        %1625 = vmatprep.subr.mxu0 0.0
        %1626 = vmatpush1.msra.mxu0 0.0
        %1627 = vmatprep.subr.mxu0 0.0
        %1628 = vmatpush1.msra.mxu0 0.0
        %1629 = vmatprep.subr.mxu0 0.0
        %1630 = vmatpush1.msra.mxu0 0.0
        %1631 = vmatprep.subr.mxu0 0.0
        %1632 = vmatpush1.msra.mxu0 0.0
        %1633 = vmatprep.subr.mxu0 0.0
        %1634 = vmatpush1.msra.mxu0 0.0
        %1635 = vmatprep.subr.mxu0 0.0
        %1636 = vmatpush1.msra.mxu0 0.0
        %1637 = vmatprep.subr.mxu0 0.0
        %1638 = vmatpush1.msra.mxu0 0.0
        %1639 = vmatprep.subr.mxu0 0.0
        %1640 = vmatpush1.msra.mxu0 0.0
        %1641 = vmatprep.subr.mxu0 0.0
        %1642 = vmatpush1.msra.mxu0 0.0
        %1643 = vmatprep.subr.mxu0 0.0
        %1644 = vmatpush1.msra.mxu0 %v941
        %1645 = vmatprep.subr.mxu0 0.0
        %1646 = vmatpush2.msra.mxu0 0.0
        %1647 = vmatprep.subr.mxu0 0.0
        %1648 = vmatpush2.msra.mxu0 0.0
        %1649 = vmatprep.subr.mxu0 0.0
        %1650 = vmatpush2.msra.mxu0 0.0
        %1651 = vmatprep.subr.mxu0 0.0
        %1652 = vmatpush2.msra.mxu0 0.0
        %1653 = vmatprep.subr.mxu0 0.0
        %1654 = vmatpush2.msra.mxu0 0.0
        %1655 = vmatprep.subr.mxu0 0.0
        %1656 = vmatpush2.msra.mxu0 0.0
        %1657 = vmatprep.subr.mxu0 0.0
        %1658 = vmatpush2.msra.mxu0 0.0
        %1659 = vmatprep.subr.mxu0 0.0
        %1660 = vmatpush2.msra.mxu0 0.0
        %1661 = vmatprep.subr.mxu0 0.0
        %1662 = vmatpush2.msra.mxu0 0.0
        %1663 = vmatprep.subr.mxu0 0.0
        %1664 = vmatpush2.msra.mxu0 0.0
        %1665 = vmatprep.subr.mxu0 0.0
        %1666 = vmatpush2.msra.mxu0 0.0
        %1667 = vmatprep.subr.mxu0 0.0
        %1668 = vmatpush2.msra.mxu0 0.0
        %1669 = vmatprep.subr.mxu0 0.0
        %1670 = vmatpush2.msra.mxu0 0.0
        %1671 = vmatprep.subr.mxu0 0.0
        %1672 = vmatpush2.msra.mxu0 0.0
        %1673 = vmatprep.subr.mxu0 0.0
        %1674 = vmatpush2.msra.mxu0 0.0
        %1675 = vmatprep.subr.mxu0 0.0
        %1676 = vmatpush2.msra.mxu0 0.0
        %1677 = vmatprep.mubr.f32.mxu0 0.0
        %1678 = vmatmul.mubr.f32.gmra.mxu0 %v1608
        %v1679 = vpop.f32.mrf.mxu0
        %v1680 = vadd.f32 0.0, %v1679
        %v1681 = vpop.f32.mrf.mxu0
        %1682 = vmatprep.mubr.f32.mxu0 0.0
        %1683 = vmatmul.mubr.f32.gmra.mxu0 %v1611
        %v1684 = vpop.f32.mrf.mxu0
        %v1685 = vadd.f32 0.0, %v1684
        %v1686 = vpop.f32.mrf.mxu0
        %1687 = vdwg.mxu0
        %1690 = vrot.lane.b32.xlu0 %v1518, 8
        %v1691 = vpop.permute.xlu0 %1690
        %1692 = vrot.lane.b32.xlu0 %v1523, 8
        %v1693 = vpop.permute.xlu0 %1692
        %1698 = vrot.lane.b32.xlu0 %v1599, 16
        %v1699 = vpop.permute.xlu0 %1698
        %1700 = vrot.lane.b32.xlu0 %v1604, 16
        %v1701 = vpop.permute.xlu0 %1700
        %1706 = vrot.lane.b32.xlu0 %v1680, 24
        %v1707 = vpop.permute.xlu0 %1706
        %1708 = vrot.lane.b32.xlu0 %v1685, 24
        %v1709 = vpop.permute.xlu0 %1708
        %v1712 = vsel %vm943, %v1437, %v1691
        %v1713 = vsel %vm943, %v1442, %v1693
        %vm1714 = vcmask 130048
        %v1715 = vsel %vm1714, %v1712, %v1699
        %v1716 = vsel %vm1714, %v1713, %v1701
        %vm1717 = vcmask 195584
        %v1718 = vsel %vm1717, %v1715, %v1707
        %v1719 = vsel %vm1717, %v1716, %v1709
        %v1720 = vld [vmem:[%s12] sm:$0xff]
        %v1721 = vld [vmem:[%s12 + $0x8] sm:$0xff]
        %v1722 = vld [vmem:[%s12 + $0x10] sm:$0xff]
        %v1723 = vld [vmem:[%s12 + $0x18] sm:$0xff]
        %v1724 = vld [vmem:[%s13] sm:$0x1]
        %v1726 = vlaneseq
        %v1727 = vshrl.u32 %v1726, 7
        %v1728 = vsub.s32 0, %v1727
        %v1729 = vrot.slane %v1724, %v1728
        %v1732 = vsel %vm596, %v1718, 0
        %v1735 = vsel %vm596, %v1719, 0
        %1737 = vmatprep.subr.mxu0 0.0
        %1738 = vmatpush1.msra.mxu0 0.0
        %1739 = vmatprep.subr.mxu0 0.0
        %1740 = vmatpush1.msra.mxu0 0.0
        %1741 = vmatprep.subr.mxu0 0.0
        %1742 = vmatpush1.msra.mxu0 0.0
        %1743 = vmatprep.subr.mxu0 0.0
        %1744 = vmatpush1.msra.mxu0 0.0
        %1745 = vmatprep.subr.mxu0 0.0
        %1746 = vmatpush1.msra.mxu0 0.0
        %1747 = vmatprep.subr.mxu0 0.0
        %1748 = vmatpush1.msra.mxu0 0.0
        %1749 = vmatprep.subr.mxu0 0.0
        %1750 = vmatpush1.msra.mxu0 0.0
        %1751 = vmatprep.subr.mxu0 0.0
        %1752 = vmatpush1.msra.mxu0 0.0
        %1753 = vmatprep.subr.mxu0 0.0
        %1754 = vmatpush1.msra.mxu0 0.0
        %1755 = vmatprep.subr.mxu0 0.0
        %1756 = vmatpush1.msra.mxu0 0.0
        %1757 = vmatprep.subr.mxu0 0.0
        %1758 = vmatpush1.msra.mxu0 0.0
        %1759 = vmatprep.subr.mxu0 0.0
        %1760 = vmatpush1.msra.mxu0 0.0
        %1761 = vmatprep.subr.mxu0 0.0
        %1762 = vmatpush1.msra.mxu0 %v1723
        %1763 = vmatprep.subr.mxu0 0.0
        %1764 = vmatpush1.msra.mxu0 %v1722
        %1765 = vmatprep.subr.mxu0 0.0
        %1766 = vmatpush1.msra.mxu0 %v1721
        %1767 = vmatprep.subr.mxu0 0.0
        %1768 = vmatpush1.msra.mxu0 %v1720
        %1769 = vmatprep.subr.mxu0 0.0
        %1770 = vmatpush2.msra.mxu0 0.0
        %1771 = vmatprep.subr.mxu0 0.0
        %1772 = vmatpush2.msra.mxu0 0.0
        %1773 = vmatprep.subr.mxu0 0.0
        %1774 = vmatpush2.msra.mxu0 0.0
        %1775 = vmatprep.subr.mxu0 0.0
        %1776 = vmatpush2.msra.mxu0 0.0
        %1777 = vmatprep.subr.mxu0 0.0
        %1778 = vmatpush2.msra.mxu0 0.0
        %1779 = vmatprep.subr.mxu0 0.0
        %1780 = vmatpush2.msra.mxu0 0.0
        %1781 = vmatprep.subr.mxu0 0.0
        %1782 = vmatpush2.msra.mxu0 0.0
        %1783 = vmatprep.subr.mxu0 0.0
        %1784 = vmatpush2.msra.mxu0 0.0
        %1785 = vmatprep.subr.mxu0 0.0
        %1786 = vmatpush2.msra.mxu0 0.0
        %1787 = vmatprep.subr.mxu0 0.0
        %1788 = vmatpush2.msra.mxu0 0.0
        %1789 = vmatprep.subr.mxu0 0.0
        %1790 = vmatpush2.msra.mxu0 0.0
        %1791 = vmatprep.subr.mxu0 0.0
        %1792 = vmatpush2.msra.mxu0 0.0
        %1793 = vmatprep.subr.mxu0 0.0
        %1794 = vmatpush2.msra.mxu0 0.0
        %1795 = vmatprep.subr.mxu0 0.0
        %1796 = vmatpush2.msra.mxu0 0.0
        %1797 = vmatprep.subr.mxu0 0.0
        %1798 = vmatpush2.msra.mxu0 0.0
        %1799 = vmatprep.subr.mxu0 0.0
        %1800 = vmatpush2.msra.mxu0 0.0
        %1801 = vmatprep.mubr.f32.mxu0 0.0
        %1802 = vmatmul.mubr.f32.gmra.mxu0 %v1732
        %v1803 = vpop.f32.mrf.mxu0
        %v1804 = vadd.f32 %v1729, %v1803
        %v1805 = vpop.f32.mrf.mxu0
        %1806 = vmatprep.mubr.f32.mxu0 0.0
        %1807 = vmatmul.mubr.f32.gmra.mxu0 %v1735
        %v1808 = vpop.f32.mrf.mxu0
        %v1809 = vadd.f32 %v1729, %v1808
        %v1810 = vpop.f32.mrf.mxu0
        %1811 = vdwg.mxu0
        %v1812 = vadd.f32 %v591, %v1804
        %v1813 = vadd.f32 %v592, %v1809
        %v1814 = vld [vmem:[%s4] sm:$0x1]
        %v1815 = vld [vmem:[%s5] sm:$0x1]
        %v1816 = vsel %vm596, %v1812, 0.0
        %1817 = vadd.xlane.f32.xlu0 %v1816
        %v1818 = vpop.xlane.xlu0 %1817
        %v1819 = vsel %vm596, %v1813, 0.0
        %1820 = vadd.xlane.f32.xlu0 %v1819
        %v1821 = vpop.xlane.xlu0 %1820
        %v1822 = vmul.f32 %v1818, %v603
        %v1823 = vmul.f32 %v1821, %v603
        %v1824 = vsub.f32 %v1812, %v1822
        %v1825 = vsub.f32 %v1813, %v1823
        %v1826 = vmul.f32 %v1824, %v1824
        %v1827 = vmul.f32 %v1825, %v1825
        %v1828 = vsel %vm596, %v1826, 0.0
        %1829 = vadd.xlane.f32.xlu0 %v1828
        %v1830 = vpop.xlane.xlu0 %1829
        %v1831 = vsel %vm596, %v1827, 0.0
        %1832 = vadd.xlane.f32.xlu0 %v1831
        %v1833 = vpop.xlane.xlu0 %1832
        %v1834 = vmul.f32 %v1830, %v616
        %v1835 = vmul.f32 %v1833, %v616
        %v1836 = vrsqrt.pop %v1834
        %v1837 = vmul.f32 %v1834, %v1836
        %vm1838 = vcmp.eq.f32.partialorder %v1834, inf
        %v1839 = vsel %vm1838, %v1834, %v1837
        %vm1840 = vcmp.eq.f32.partialorder %v1834, 0.0
        %v1841 = vand.u32 %v1834, 2147483648
        %v1842 = vsel %vm1840, %v1841, %v1839
        %v1843 = vrsqrt.pop %v1835
        %v1844 = vmul.f32 %v1835, %v1843
        %vm1845 = vcmp.eq.f32.partialorder %v1835, inf
        %v1846 = vsel %vm1845, %v1835, %v1844
        %vm1847 = vcmp.eq.f32.partialorder %v1835, 0.0
        %v1848 = vand.u32 %v1835, 2147483648
        %v1849 = vsel %vm1847, %v1848, %v1846
        %v1851 = vlaneseq
        %v1852 = vshrl.u32 %v1851, 7
        %v1853 = vsub.s32 0, %v1852
        %v1854 = vrot.slane %v1814, %v1853
        %v1856 = vmul.f32 %v1854, %v1824
        %v1857 = vmul.f32 %v1854, %v1825
        %v1858 = vadd.f32 %v1842, 1e-06
        %v1859 = vadd.f32 %v1849, 1e-06
        %v1860 = vrcp.pop %v1858
        %v1861 = vmul.f32 %v1856, %v1860
        %v1862 = vrcp.pop %v1859
        %v1863 = vmul.f32 %v1857, %v1862
        %v1865 = vlaneseq
        %v1866 = vshrl.u32 %v1865, 7
        %v1867 = vsub.s32 0, %v1866
        %v1868 = vrot.slane %v1815, %v1867
        %v1870 = vadd.f32 %v1861, %v1868
        %v1871 = vadd.f32 %v1863, %v1868
        %v1872 = vld [vmem:[%s14] sm:$0xff]
        %v1873 = vld [vmem:[%s14 + $0x8] sm:$0xff]
        %v1874 = vld [vmem:[%s14 + $0x10] sm:$0xff]
        %v1875 = vld [vmem:[%s14 + $0x18] sm:$0xff]
        %v1876 = vld [vmem:[%s14 + $0x20] sm:$0xff]
        %v1877 = vld [vmem:[%s14 + $0x28] sm:$0xff]
        %v1878 = vld [vmem:[%s14 + $0x30] sm:$0xff]
        %v1879 = vld [vmem:[%s14 + $0x38] sm:$0xff]
        %v1880 = vld [vmem:[%s14 + $0x40] sm:$0xff]
        %v1881 = vld [vmem:[%s14 + $0x48] sm:$0xff]
        %v1882 = vld [vmem:[%s14 + $0x50] sm:$0xff]
        %v1883 = vld [vmem:[%s14 + $0x58] sm:$0xff]
        %v1884 = vld [vmem:[%s14 + $0x60] sm:$0xff]
        %v1885 = vld [vmem:[%s14 + $0x68] sm:$0xff]
        %v1886 = vld [vmem:[%s14 + $0x70] sm:$0xff]
        %v1887 = vld [vmem:[%s14 + $0x78] sm:$0xff]
        %v1888 = vld [vmem:[%s15] sm:$0xf]
        %v1890 = vlaneseq
        %v1891 = vshrl.u32 %v1890, 7
        %v1892 = vsub.s32 0, %v1891
        %v1893 = vrot.slane %v1888, %v1892
        %v1894 = vlaneseq
        %v1895 = vshrl.u32 %v1894, 7
        %v1896 = vsub.s32 1, %v1895
        %v1897 = vrot.slane %v1888, %v1896
        %v1898 = vlaneseq
        %v1899 = vshrl.u32 %v1898, 7
        %v1900 = vsub.s32 2, %v1899
        %v1901 = vrot.slane %v1888, %v1900
        %v1902 = vlaneseq
        %v1903 = vshrl.u32 %v1902, 7
        %v1904 = vsub.s32 3, %v1903
        %v1905 = vrot.slane %v1888, %v1904
        %v1911 = vsel %vm596, %v1870, 0
        %v1914 = vsel %vm596, %v1871, 0
        %1916 = vmatprep.subr.mxu0 0.0
        %1917 = vmatpush1.msra.mxu0 0.0
        %1918 = vmatprep.subr.mxu0 0.0
        %1919 = vmatpush1.msra.mxu0 0.0
        %1920 = vmatprep.subr.mxu0 0.0
        %1921 = vmatpush1.msra.mxu0 0.0
        %1922 = vmatprep.subr.mxu0 0.0
        %1923 = vmatpush1.msra.mxu0 0.0
        %1924 = vmatprep.subr.mxu0 0.0
        %1925 = vmatpush1.msra.mxu0 0.0
        %1926 = vmatprep.subr.mxu0 0.0
        %1927 = vmatpush1.msra.mxu0 0.0
        %1928 = vmatprep.subr.mxu0 0.0
        %1929 = vmatpush1.msra.mxu0 0.0
        %1930 = vmatprep.subr.mxu0 0.0
        %1931 = vmatpush1.msra.mxu0 0.0
        %1932 = vmatprep.subr.mxu0 0.0
        %1933 = vmatpush1.msra.mxu0 0.0
        %1934 = vmatprep.subr.mxu0 0.0
        %1935 = vmatpush1.msra.mxu0 0.0
        %1936 = vmatprep.subr.mxu0 0.0
        %1937 = vmatpush1.msra.mxu0 0.0
        %1938 = vmatprep.subr.mxu0 0.0
        %1939 = vmatpush1.msra.mxu0 0.0
        %1940 = vmatprep.subr.mxu0 %v1885
        %1941 = vmatpush1.msra.mxu0 %v1884
        %1942 = vmatprep.subr.mxu0 %v1881
        %1943 = vmatpush1.msra.mxu0 %v1880
        %1944 = vmatprep.subr.mxu0 %v1877
        %1945 = vmatpush1.msra.mxu0 %v1876
        %1946 = vmatprep.subr.mxu0 %v1873
        %1947 = vmatpush1.msra.mxu0 %v1872
        %1948 = vmatprep.subr.mxu0 0.0
        %1949 = vmatpush2.msra.mxu0 0.0
        %1950 = vmatprep.subr.mxu0 0.0
        %1951 = vmatpush2.msra.mxu0 0.0
        %1952 = vmatprep.subr.mxu0 0.0
        %1953 = vmatpush2.msra.mxu0 0.0
        %1954 = vmatprep.subr.mxu0 0.0
        %1955 = vmatpush2.msra.mxu0 0.0
        %1956 = vmatprep.subr.mxu0 0.0
        %1957 = vmatpush2.msra.mxu0 0.0
        %1958 = vmatprep.subr.mxu0 0.0
        %1959 = vmatpush2.msra.mxu0 0.0
        %1960 = vmatprep.subr.mxu0 0.0
        %1961 = vmatpush2.msra.mxu0 0.0
        %1962 = vmatprep.subr.mxu0 0.0
        %1963 = vmatpush2.msra.mxu0 0.0
        %1964 = vmatprep.subr.mxu0 0.0
        %1965 = vmatpush2.msra.mxu0 0.0
        %1966 = vmatprep.subr.mxu0 0.0
        %1967 = vmatpush2.msra.mxu0 0.0
        %1968 = vmatprep.subr.mxu0 0.0
        %1969 = vmatpush2.msra.mxu0 0.0
        %1970 = vmatprep.subr.mxu0 0.0
        %1971 = vmatpush2.msra.mxu0 0.0
        %1972 = vmatprep.subr.mxu0 0.0
        %1973 = vmatpush2.msra.mxu0 0.0
        %1974 = vmatprep.subr.mxu0 0.0
        %1975 = vmatpush2.msra.mxu0 0.0
        %1976 = vmatprep.subr.mxu0 0.0
        %1977 = vmatpush2.msra.mxu0 0.0
        %1978 = vmatprep.subr.mxu0 0.0
        %1979 = vmatpush2.msra.mxu0 0.0
        %1980 = vmatprep.mubr.f32.mxu0 0.0
        %1981 = vmatmul.mubr.f32.gmra.mxu0 %v1911
        %v1982 = vpop.f32.mrf.mxu0
        %v1983 = vadd.f32 %v1893, %v1982
        %v1984 = vpop.f32.mrf.mxu0
        %v1985 = vadd.f32 %v1897, %v1984
        %1986 = vmatprep.mubr.f32.mxu0 0.0
        %1987 = vmatmul.mubr.f32.gmra.mxu0 %v1914
        %v1988 = vpop.f32.mrf.mxu0
        %v1989 = vadd.f32 %v1893, %v1988
        %v1990 = vpop.f32.mrf.mxu0
        %v1991 = vadd.f32 %v1897, %v1990
        %1992 = vdwg.mxu0
        %1993 = vmatprep.subr.mxu0 0.0
        %1994 = vmatpush1.msra.mxu0 0.0
        %1995 = vmatprep.subr.mxu0 0.0
        %1996 = vmatpush1.msra.mxu0 0.0
        %1997 = vmatprep.subr.mxu0 0.0
        %1998 = vmatpush1.msra.mxu0 0.0
        %1999 = vmatprep.subr.mxu0 0.0
        %2000 = vmatpush1.msra.mxu0 0.0
        %2001 = vmatprep.subr.mxu0 0.0
        %2002 = vmatpush1.msra.mxu0 0.0
        %2003 = vmatprep.subr.mxu0 0.0
        %2004 = vmatpush1.msra.mxu0 0.0
        %2005 = vmatprep.subr.mxu0 0.0
        %2006 = vmatpush1.msra.mxu0 0.0
        %2007 = vmatprep.subr.mxu0 0.0
        %2008 = vmatpush1.msra.mxu0 0.0
        %2009 = vmatprep.subr.mxu0 0.0
        %2010 = vmatpush1.msra.mxu0 0.0
        %2011 = vmatprep.subr.mxu0 0.0
        %2012 = vmatpush1.msra.mxu0 0.0
        %2013 = vmatprep.subr.mxu0 0.0
        %2014 = vmatpush1.msra.mxu0 0.0
        %2015 = vmatprep.subr.mxu0 0.0
        %2016 = vmatpush1.msra.mxu0 0.0
        %2017 = vmatprep.subr.mxu0 %v1887
        %2018 = vmatpush1.msra.mxu0 %v1886
        %2019 = vmatprep.subr.mxu0 %v1883
        %2020 = vmatpush1.msra.mxu0 %v1882
        %2021 = vmatprep.subr.mxu0 %v1879
        %2022 = vmatpush1.msra.mxu0 %v1878
        %2023 = vmatprep.subr.mxu0 %v1875
        %2024 = vmatpush1.msra.mxu0 %v1874
        %2025 = vmatprep.subr.mxu0 0.0
        %2026 = vmatpush2.msra.mxu0 0.0
        %2027 = vmatprep.subr.mxu0 0.0
        %2028 = vmatpush2.msra.mxu0 0.0
        %2029 = vmatprep.subr.mxu0 0.0
        %2030 = vmatpush2.msra.mxu0 0.0
        %2031 = vmatprep.subr.mxu0 0.0
        %2032 = vmatpush2.msra.mxu0 0.0
        %2033 = vmatprep.subr.mxu0 0.0
        %2034 = vmatpush2.msra.mxu0 0.0
        %2035 = vmatprep.subr.mxu0 0.0
        %2036 = vmatpush2.msra.mxu0 0.0
        %2037 = vmatprep.subr.mxu0 0.0
        %2038 = vmatpush2.msra.mxu0 0.0
        %2039 = vmatprep.subr.mxu0 0.0
        %2040 = vmatpush2.msra.mxu0 0.0
        %2041 = vmatprep.subr.mxu0 0.0
        %2042 = vmatpush2.msra.mxu0 0.0
        %2043 = vmatprep.subr.mxu0 0.0
        %2044 = vmatpush2.msra.mxu0 0.0
        %2045 = vmatprep.subr.mxu0 0.0
        %2046 = vmatpush2.msra.mxu0 0.0
        %2047 = vmatprep.subr.mxu0 0.0
        %2048 = vmatpush2.msra.mxu0 0.0
        %2049 = vmatprep.subr.mxu0 0.0
        %2050 = vmatpush2.msra.mxu0 0.0
        %2051 = vmatprep.subr.mxu0 0.0
        %2052 = vmatpush2.msra.mxu0 0.0
        %2053 = vmatprep.subr.mxu0 0.0
        %2054 = vmatpush2.msra.mxu0 0.0
        %2055 = vmatprep.subr.mxu0 0.0
        %2056 = vmatpush2.msra.mxu0 0.0
        %2057 = vmatprep.mubr.f32.mxu0 0.0
        %2058 = vmatmul.mubr.f32.gmra.mxu0 %v1911
        %v2059 = vpop.f32.mrf.mxu0
        %v2060 = vadd.f32 %v1901, %v2059
        %v2061 = vpop.f32.mrf.mxu0
        %v2062 = vadd.f32 %v1905, %v2061
        %2063 = vmatprep.mubr.f32.mxu0 0.0
        %2064 = vmatmul.mubr.f32.gmra.mxu0 %v1914
        %v2065 = vpop.f32.mrf.mxu0
        %v2066 = vadd.f32 %v1901, %v2065
        %v2067 = vpop.f32.mrf.mxu0
        %v2068 = vadd.f32 %v1905, %v2067
        %2069 = vdwg.mxu0
        %v2070 = vmax.f32 %v1983, 0.0
        %v2071 = vmax.f32 %v1985, 0.0
        %v2072 = vmax.f32 %v2060, 0.0
        %v2073 = vmax.f32 %v2062, 0.0
        %v2074 = vmax.f32 %v1989, 0.0
        %v2075 = vmax.f32 %v1991, 0.0
        %v2076 = vmax.f32 %v2066, 0.0
        %v2077 = vmax.f32 %v2068, 0.0
        %v2078 = vld [vmem:[%s16] sm:$0xff]
        %v2079 = vld [vmem:[%s16 + $0x8] sm:$0xff]
        %v2080 = vld [vmem:[%s16 + $0x10] sm:$0xff]
        %v2081 = vld [vmem:[%s16 + $0x18] sm:$0xff]
        %v2082 = vld [vmem:[%s16 + $0x20] sm:$0xff]
        %v2083 = vld [vmem:[%s16 + $0x28] sm:$0xff]
        %v2084 = vld [vmem:[%s16 + $0x30] sm:$0xff]
        %v2085 = vld [vmem:[%s16 + $0x38] sm:$0xff]
        %v2086 = vld [vmem:[%s16 + $0x40] sm:$0xff]
        %v2087 = vld [vmem:[%s16 + $0x48] sm:$0xff]
        %v2088 = vld [vmem:[%s16 + $0x50] sm:$0xff]
        %v2089 = vld [vmem:[%s16 + $0x58] sm:$0xff]
        %v2090 = vld [vmem:[%s16 + $0x60] sm:$0xff]
        %v2091 = vld [vmem:[%s16 + $0x68] sm:$0xff]
        %v2092 = vld [vmem:[%s16 + $0x70] sm:$0xff]
        %v2093 = vld [vmem:[%s16 + $0x78] sm:$0xff]
        %v2094 = vld [vmem:[%s16 + $0x80] sm:$0xff]
        %v2095 = vld [vmem:[%s16 + $0x88] sm:$0xff]
        %v2096 = vld [vmem:[%s16 + $0x90] sm:$0xff]
        %v2097 = vld [vmem:[%s16 + $0x98] sm:$0xff]
        %v2098 = vld [vmem:[%s16 + $0xa0] sm:$0xff]
        %v2099 = vld [vmem:[%s16 + $0xa8] sm:$0xff]
        %v2100 = vld [vmem:[%s16 + $0xb0] sm:$0xff]
        %v2101 = vld [vmem:[%s16 + $0xb8] sm:$0xff]
        %v2102 = vld [vmem:[%s16 + $0xc0] sm:$0xff]
        %v2103 = vld [vmem:[%s16 + $0xc8] sm:$0xff]
        %v2104 = vld [vmem:[%s16 + $0xd0] sm:$0xff]
        %v2105 = vld [vmem:[%s16 + $0xd8] sm:$0xff]
        %v2106 = vld [vmem:[%s16 + $0xe0] sm:$0xff]
        %v2107 = vld [vmem:[%s16 + $0xe8] sm:$0xff]
        %v2108 = vld [vmem:[%s16 + $0xf0] sm:$0xff]
        %v2109 = vld [vmem:[%s16 + $0xf8] sm:$0xff]
        %v2110 = vld [vmem:[%s16 + $0x100] sm:$0xff]
        %v2111 = vld [vmem:[%s16 + $0x108] sm:$0xff]
        %v2112 = vld [vmem:[%s16 + $0x110] sm:$0xff]
        %v2113 = vld [vmem:[%s16 + $0x118] sm:$0xff]
        %v2114 = vld [vmem:[%s16 + $0x120] sm:$0xff]
        %v2115 = vld [vmem:[%s16 + $0x128] sm:$0xff]
        %v2116 = vld [vmem:[%s16 + $0x130] sm:$0xff]
        %v2117 = vld [vmem:[%s16 + $0x138] sm:$0xff]
        %v2118 = vld [vmem:[%s16 + $0x140] sm:$0xff]
        %v2119 = vld [vmem:[%s16 + $0x148] sm:$0xff]
        %v2120 = vld [vmem:[%s16 + $0x150] sm:$0xff]
        %v2121 = vld [vmem:[%s16 + $0x158] sm:$0xff]
        %v2122 = vld [vmem:[%s16 + $0x160] sm:$0xff]
        %v2123 = vld [vmem:[%s16 + $0x168] sm:$0xff]
        %v2124 = vld [vmem:[%s16 + $0x170] sm:$0xff]
        %v2125 = vld [vmem:[%s16 + $0x178] sm:$0xff]
        %v2126 = vld [vmem:[%s16 + $0x180] sm:$0xff]
        %v2127 = vld [vmem:[%s16 + $0x188] sm:$0xff]
        %v2128 = vld [vmem:[%s16 + $0x190] sm:$0xff]
        %v2129 = vld [vmem:[%s16 + $0x198] sm:$0xff]
        %v2130 = vld [vmem:[%s16 + $0x1a0] sm:$0xff]
        %v2131 = vld [vmem:[%s16 + $0x1a8] sm:$0xff]
        %v2132 = vld [vmem:[%s16 + $0x1b0] sm:$0xff]
        %v2133 = vld [vmem:[%s16 + $0x1b8] sm:$0xff]
        %v2134 = vld [vmem:[%s16 + $0x1c0] sm:$0xff]
        %v2135 = vld [vmem:[%s16 + $0x1c8] sm:$0xff]
        %v2136 = vld [vmem:[%s16 + $0x1d0] sm:$0xff]
        %v2137 = vld [vmem:[%s16 + $0x1d8] sm:$0xff]
        %v2138 = vld [vmem:[%s16 + $0x1e0] sm:$0xff]
        %v2139 = vld [vmem:[%s16 + $0x1e8] sm:$0xff]
        %v2140 = vld [vmem:[%s16 + $0x1f0] sm:$0xff]
        %v2141 = vld [vmem:[%s16 + $0x1f8] sm:$0xff]
        %v2142 = vld [vmem:[%s17] sm:$0x1]
        %v2144 = vlaneseq
        %v2145 = vshrl.u32 %v2144, 7
        %v2146 = vsub.s32 0, %v2145
        %v2147 = vrot.slane %v2142, %v2146
        %2149 = vmatprep.subr.mxu0 0.0
        %2150 = vmatpush1.msra.mxu0 %v2093
        %2151 = vmatprep.subr.mxu0 0.0
        %2152 = vmatpush1.msra.mxu0 %v2092
        %2153 = vmatprep.subr.mxu0 0.0
        %2154 = vmatpush1.msra.mxu0 %v2091
        %2155 = vmatprep.subr.mxu0 0.0
        %2156 = vmatpush1.msra.mxu0 %v2090
        %2157 = vmatprep.subr.mxu0 0.0
        %2158 = vmatpush1.msra.mxu0 %v2089
        %2159 = vmatprep.subr.mxu0 0.0
        %2160 = vmatpush1.msra.mxu0 %v2088
        %2161 = vmatprep.subr.mxu0 0.0
        %2162 = vmatpush1.msra.mxu0 %v2087
        %2163 = vmatprep.subr.mxu0 0.0
        %2164 = vmatpush1.msra.mxu0 %v2086
        %2165 = vmatprep.subr.mxu0 0.0
        %2166 = vmatpush1.msra.mxu0 %v2085
        %2167 = vmatprep.subr.mxu0 0.0
        %2168 = vmatpush1.msra.mxu0 %v2084
        %2169 = vmatprep.subr.mxu0 0.0
        %2170 = vmatpush1.msra.mxu0 %v2083
        %2171 = vmatprep.subr.mxu0 0.0
        %2172 = vmatpush1.msra.mxu0 %v2082
        %2173 = vmatprep.subr.mxu0 0.0
        %2174 = vmatpush1.msra.mxu0 %v2081
        %2175 = vmatprep.subr.mxu0 0.0
        %2176 = vmatpush1.msra.mxu0 %v2080
        %2177 = vmatprep.subr.mxu0 0.0
        %2178 = vmatpush1.msra.mxu0 %v2079
        %2179 = vmatprep.subr.mxu0 0.0
        %2180 = vmatpush1.msra.mxu0 %v2078
        %2181 = vmatprep.subr.mxu0 0.0
        %2182 = vmatpush2.msra.mxu0 %v2109
        %2183 = vmatprep.subr.mxu0 0.0
        %2184 = vmatpush2.msra.mxu0 %v2108
        %2185 = vmatprep.subr.mxu0 0.0
        %2186 = vmatpush2.msra.mxu0 %v2107
        %2187 = vmatprep.subr.mxu0 0.0
        %2188 = vmatpush2.msra.mxu0 %v2106
        %2189 = vmatprep.subr.mxu0 0.0
        %2190 = vmatpush2.msra.mxu0 %v2105
        %2191 = vmatprep.subr.mxu0 0.0
        %2192 = vmatpush2.msra.mxu0 %v2104
        %2193 = vmatprep.subr.mxu0 0.0
        %2194 = vmatpush2.msra.mxu0 %v2103
        %2195 = vmatprep.subr.mxu0 0.0
        %2196 = vmatpush2.msra.mxu0 %v2102
        %2197 = vmatprep.subr.mxu0 0.0
        %2198 = vmatpush2.msra.mxu0 %v2101
        %2199 = vmatprep.subr.mxu0 0.0
        %2200 = vmatpush2.msra.mxu0 %v2100
        %2201 = vmatprep.subr.mxu0 0.0
        %2202 = vmatpush2.msra.mxu0 %v2099
        %2203 = vmatprep.subr.mxu0 0.0
        %2204 = vmatpush2.msra.mxu0 %v2098
        %2205 = vmatprep.subr.mxu0 0.0
        %2206 = vmatpush2.msra.mxu0 %v2097
        %2207 = vmatprep.subr.mxu0 0.0
        %2208 = vmatpush2.msra.mxu0 %v2096
        %2209 = vmatprep.subr.mxu0 0.0
        %2210 = vmatpush2.msra.mxu0 %v2095
        %2211 = vmatprep.subr.mxu0 0.0
        %2212 = vmatpush2.msra.mxu0 %v2094
        %2213 = vmatprep.mubr.f32.mxu0 %v2071
        %2214 = vmatmul.mubr.f32.gmra.mxu0 %v2070
        %v2215 = vpop.f32.mrf.mxu0
        %v2216 = vadd.f32 %v2147, %v2215
        %v2217 = vpop.f32.mrf.mxu0
        %2218 = vmatprep.mubr.f32.mxu0 %v2075
        %2219 = vmatmul.mubr.f32.gmra.mxu0 %v2074
        %v2220 = vpop.f32.mrf.mxu0
        %v2221 = vadd.f32 %v2147, %v2220
        %v2222 = vpop.f32.mrf.mxu0
        %2223 = vdwg.mxu0
        %2224 = vmatprep.subr.mxu0 0.0
        %2225 = vmatpush1.msra.mxu0 %v2125
        %2226 = vmatprep.subr.mxu0 0.0
        %2227 = vmatpush1.msra.mxu0 %v2124
        %2228 = vmatprep.subr.mxu0 0.0
        %2229 = vmatpush1.msra.mxu0 %v2123
        %2230 = vmatprep.subr.mxu0 0.0
        %2231 = vmatpush1.msra.mxu0 %v2122
        %2232 = vmatprep.subr.mxu0 0.0
        %2233 = vmatpush1.msra.mxu0 %v2121
        %2234 = vmatprep.subr.mxu0 0.0
        %2235 = vmatpush1.msra.mxu0 %v2120
        %2236 = vmatprep.subr.mxu0 0.0
        %2237 = vmatpush1.msra.mxu0 %v2119
        %2238 = vmatprep.subr.mxu0 0.0
        %2239 = vmatpush1.msra.mxu0 %v2118
        %2240 = vmatprep.subr.mxu0 0.0
        %2241 = vmatpush1.msra.mxu0 %v2117
        %2242 = vmatprep.subr.mxu0 0.0
        %2243 = vmatpush1.msra.mxu0 %v2116
        %2244 = vmatprep.subr.mxu0 0.0
        %2245 = vmatpush1.msra.mxu0 %v2115
        %2246 = vmatprep.subr.mxu0 0.0
        %2247 = vmatpush1.msra.mxu0 %v2114
        %2248 = vmatprep.subr.mxu0 0.0
        %2249 = vmatpush1.msra.mxu0 %v2113
        %2250 = vmatprep.subr.mxu0 0.0
        %2251 = vmatpush1.msra.mxu0 %v2112
        %2252 = vmatprep.subr.mxu0 0.0
        %2253 = vmatpush1.msra.mxu0 %v2111
        %2254 = vmatprep.subr.mxu0 0.0
        %2255 = vmatpush1.msra.mxu0 %v2110
        %2256 = vmatprep.subr.mxu0 0.0
        %2257 = vmatpush2.msra.mxu0 %v2141
        %2258 = vmatprep.subr.mxu0 0.0
        %2259 = vmatpush2.msra.mxu0 %v2140
        %2260 = vmatprep.subr.mxu0 0.0
        %2261 = vmatpush2.msra.mxu0 %v2139
        %2262 = vmatprep.subr.mxu0 0.0
        %2263 = vmatpush2.msra.mxu0 %v2138
        %2264 = vmatprep.subr.mxu0 0.0
        %2265 = vmatpush2.msra.mxu0 %v2137
        %2266 = vmatprep.subr.mxu0 0.0
        %2267 = vmatpush2.msra.mxu0 %v2136
        %2268 = vmatprep.subr.mxu0 0.0
        %2269 = vmatpush2.msra.mxu0 %v2135
        %2270 = vmatprep.subr.mxu0 0.0
        %2271 = vmatpush2.msra.mxu0 %v2134
        %2272 = vmatprep.subr.mxu0 0.0
        %2273 = vmatpush2.msra.mxu0 %v2133
        %2274 = vmatprep.subr.mxu0 0.0
        %2275 = vmatpush2.msra.mxu0 %v2132
        %2276 = vmatprep.subr.mxu0 0.0
        %2277 = vmatpush2.msra.mxu0 %v2131
        %2278 = vmatprep.subr.mxu0 0.0
        %2279 = vmatpush2.msra.mxu0 %v2130
        %2280 = vmatprep.subr.mxu0 0.0
        %2281 = vmatpush2.msra.mxu0 %v2129
        %2282 = vmatprep.subr.mxu0 0.0
        %2283 = vmatpush2.msra.mxu0 %v2128
        %2284 = vmatprep.subr.mxu0 0.0
        %2285 = vmatpush2.msra.mxu0 %v2127
        %2286 = vmatprep.subr.mxu0 0.0
        %2287 = vmatpush2.msra.mxu0 %v2126
        %2288 = vmatprep.mubr.f32.mxu0 %v2073
        %2289 = vmatmul.mubr.f32.gmra.mxu0 %v2072
        %v2290 = vpop.f32.mrf.mxu0
        %v2291 = vadd.f32 %v2216, %v2290
        %v2292 = vpop.f32.mrf.mxu0
        %2293 = vmatprep.mubr.f32.mxu0 %v2077
        %2294 = vmatmul.mubr.f32.gmra.mxu0 %v2076
        %v2295 = vpop.f32.mrf.mxu0
        %v2296 = vadd.f32 %v2221, %v2295
        %v2297 = vpop.f32.mrf.mxu0
        %2298 = vdwg.mxu0
        %v2299 = vadd.f32 %v1812, %v2291
        %v2300 = vadd.f32 %v1813, %v2296
        %2301 = vst.msk [vmem:[%s581] sm:$0xff] %vm596, %v2299
        %2302 = vst.msk [vmem:[%s581 + $0x8] sm:$0xff] %vm596, %v2300
        %s2303 = sand.u32 %s428, 1
        %s2304 = scalar_lea.sflag [#allocation3], %s2303
        %s2305 = sand.u32 %s428, 1
        %s2306 = smul.addr %s2305, 16
        %s2307 = scalar_lea.vmem [#allocation2], %s2306
        // Predicated region
        $region93: #{brief_decoder_layer.1} parent=91 // pred_check
          %p2308 = pneg %p438
        $region94: #{brief_decoder_layer.1} parent=91 // pred_check_branch
          %2310 = sbr.rel (%p2308) target = $region96
        $region95: #{brief_decoder_layer.1} parent=91 // pred_region
          %s2312 = ssub.s32 256, 256
          %2313 = vsyncadd %s2304, %s2312
          %s2314 = smul.addr %s32, 2
          %s2315 = smul.addr %s2314, 128
          %s2316 = scalar_lea.hbm %s18, %s2315
          %s2317 = sshll.u32 %s2307, 4
          %s2318 = int_to_ptr.vmem [resolvable:$true] %s2317
          %2323 = dma.vmem_to_hbm [thread:$0]  %s2318, 256, %s2316, %s2304, 128, 128, 8
        $region96: #{brief_decoder_layer.1} parent=91 // pred_fallthru
          _
      $region92: #{brief_decoder_layer.1} parent=5 // pred_fallthru
        _
      %p2324 = scmp.le.s32.totalorder 2, %s27
      // Predicated region
      $region97: #{brief_decoder_layer.1} parent=5 // pred_check
        %p2325 = pneg %p2324
      $region98: #{brief_decoder_layer.1} parent=5 // pred_check_branch
        %2327 = sbr.rel (%p2325) target = $region100
      $region99: #{brief_decoder_layer.1} parent=5 // pred_region
        %s2328 = ssub.s32 %s27, 2
        // Predicated region
        $region101: #{brief_decoder_layer.1} parent=99 // pred_check
          %p2329 = pneg %p444
        $region102: #{brief_decoder_layer.1} parent=99 // pred_check_branch
          %2331 = sbr.rel (%p2329) target = $region104
        $region103: #{brief_decoder_layer.1} parent=99 // pred_region
          %s2332 = sand.u32 %s429, 1
          %s2333 = scalar_lea.sflag [#allocation3], %s2332
          %s2334 = sand.u32 %s429, 1
          %s2335 = smul.addr %s2334, 16
          %s2336 = scalar_lea.vmem [#allocation2], %s2335
          %2337 = dma.done %s2333, 256
        $region104: #{brief_decoder_layer.1} parent=99 // pred_fallthru
          _
      $region100: #{brief_decoder_layer.1} parent=5 // pred_fallthru
        _
    $region6: #{brief_decoder_layer.1} parent=1 // loop_footer
      %s31 = sadd.s32 1, %s27
    $region7: #{brief_decoder_layer.1} parent=1 // loop_footer_branch
      %26 = sbr.rel target = $region3
    $region8: #{brief_decoder_layer.1} parent=1 // loop_exit
      _
    %2338 = vsyncpa [#allocation3], 1
    %s2339 = scalar_lea.sflag [#allocation3], 1
    %2340 = vsyncpa %s2339, 1

</llo_original>
